<compile_context>
chip_gen: v7x
topology: tpu7x:2x2x1
jax: 0.10.0
libtpu: 0.0.40
codegen_flags: <defaults>
</compile_context>

<pallas_src>
import jax
import jax.numpy as jnp
from jax.experimental import pallas as pl
from jax.experimental.pallas import tpu as pltpu

FEAT = 504          # enginlayer is Linear(504, 504, bias=False)
FEAT_PAD = 512      # lane-aligned (multiple of 128) padded feature width


def _fused_forward_kernel(x_ref, wb_ref, we_t_ref, o_ref):
    """One invocation: both stacked inputs through cnn0 -> sigmoid -> engine -> sigmoid."""
    # cnn0 (synthetic backbone): x_flat @ Wb  -> (2B, FEAT_PAD), f32 accumulation on MXU.
    x = x_ref[...].astype(jnp.bfloat16)
    feat = jnp.dot(x, wb_ref[...], preferred_element_type=jnp.float32)
    # sigmoid -> enginlayer (no bias, weight pre-transposed & zero-padded) -> sigmoid
    g = jax.nn.sigmoid(feat).astype(jnp.bfloat16)
    h = jnp.dot(g, we_t_ref[...], preferred_element_type=jnp.float32)
    o_ref[...] = jax.nn.sigmoid(h)


def _fused_forward(x_stacked, wb_pad, we_t_pad):
    n_rows = x_stacked.shape[0]
    return pl.pallas_call(
        _fused_forward_kernel,
        out_shape=jax.ShapeDtypeStruct((n_rows, FEAT_PAD), jnp.float32),
        # Whole operands resident in VMEM, single-buffered (no grid, no pipeline).
        in_specs=[
            pl.BlockSpec(memory_space=pltpu.MemorySpace.VMEM),  # x  (2B, D)   f32  ~32 KB
            pl.BlockSpec(memory_space=pltpu.MemorySpace.VMEM),  # Wb (D, 512)  bf16 ~1 MB
            pl.BlockSpec(memory_space=pltpu.MemorySpace.VMEM),  # We (512,512) bf16 ~0.5 MB
        ],
        out_specs=pl.BlockSpec(memory_space=pltpu.MemorySpace.VMEM),
    )(x_stacked, wb_pad, we_t_pad)


def prepare_params(w_backbone, w_engine):
    """One-time parameter prep: bf16 cast, FEAT->512 zero pad, engine transpose.

    w_backbone: (C*H*W, 504) — synthetic backbone Linear weight (already x@W form).
    w_engine:   (504, 504)   — nn.Linear weight, (out_features, in_features).
    """
    in_dim, f = w_backbone.shape
    wb_pad = jnp.zeros((in_dim, FEAT_PAD), jnp.bfloat16)
    wb_pad = wb_pad.at[:, :f].set(w_backbone.astype(jnp.bfloat16))
    # nn.Linear computes y = g @ W.T ; transpose ONCE here, zero-pad to 512x512.
    # Padded input rows are zero, so the sigmoid(0)=0.5 junk in padded columns of
    # the first layer's activation contributes nothing to the second matmul.
    we_t_pad = jnp.zeros((FEAT_PAD, FEAT_PAD), jnp.bfloat16)
    we_t_pad = we_t_pad.at[:f, :f].set(w_engine.T.astype(jnp.bfloat16))
    return wb_pad, we_t_pad


@jax.jit
def contrastive_forward(x0_nchw, x1_nchw, wb_pad, we_t_pad):
    """ContrastiveNetwork.forward: returns (output0, output1), each (B, 504)."""
    B = x0_nchw.shape[0]
    x0_flat = x0_nchw.reshape(B, -1)  # row-major flatten == torch .view(B, -1)
    x1_flat = x1_nchw.reshape(B, -1)
    x_stacked = jnp.concatenate([x0_flat, x1_flat], axis=0)  # (2B, D)
    out = _fused_forward(x_stacked, wb_pad, we_t_pad)        # (2B, 512)
    out0 = out[:B, :FEAT]
    out1 = out[B:, :FEAT]
    return out0, out1


if __name__ == "__main__":
    key = jax.random.PRNGKey(0)
    k_x0, k_x1, k_wb, k_we = jax.random.split(key, 4)

    # Small NCHW inputs: batch=2, channels=4, spatial=16x16
    B, C, H, W = 2, 4, 16, 16
    x0 = jax.random.normal(k_x0, (B, C, H, W), dtype=jnp.float32)
    x1 = jax.random.normal(k_x1, (B, C, H, W), dtype=jnp.float32)

    in_dim = C * H * W  # 1024

    # Deterministic PyTorch-style init: uniform(-1/sqrt(fan_in), +1/sqrt(fan_in))
    wb_bound = 1.0 / jnp.sqrt(jnp.float32(in_dim))
    w_backbone = jax.random.uniform(
        k_wb, (in_dim, FEAT), dtype=jnp.float32, minval=-wb_bound, maxval=wb_bound
    )
    we_bound = 1.0 / jnp.sqrt(jnp.float32(FEAT))
    # nn.Linear weight shape is (out_features, in_features) = (504, 504)
    w_engine = jax.random.uniform(
        k_we, (FEAT, FEAT), dtype=jnp.float32, minval=-we_bound, maxval=we_bound
    )

    # One-time parameter preparation (pad + bf16 + transpose), outside the hot path.
    wb_pad, we_t_pad = prepare_params(w_backbone, w_engine)

    out0, out1 = contrastive_forward(x0, x1, wb_pad, we_t_pad)
    jax.block_until_ready((out0, out1))

    assert out0.shape == (B, FEAT) and out1.shape == (B, FEAT)
    assert bool(jnp.all((out0 > 0.0) & (out0 < 1.0)))  # sigmoid range sanity check
    assert bool(jnp.all((out1 > 0.0) & (out1 < 1.0)))

    print("KERNEL_OK")
</pallas_src>

<mosaic_0001>
module attributes {stable_mosaic.version = 11 : i64} {
  func.func @_fused_forward_kernel(%arg0: memref<4x1024xf32, #tpu.memory_space<vmem>>, %arg1: memref<1024x512xbf16, #tpu.memory_space<vmem>>, %arg2: memref<512x512xbf16, #tpu.memory_space<vmem>>, %arg3: memref<4x512xf32, #tpu.memory_space<vmem>>) attributes {dimension_semantics = [], scalar_prefetch = 0 : i64, scratch_operands = 0 : i64, tpu.core_type = #tpu.core_type<tc>} {
    %c0 = arith.constant 0 : index
    %c0_0 = arith.constant 0 : index
    %0 = vector.load %arg0[%c0, %c0_0] : memref<4x1024xf32, #tpu.memory_space<vmem>>, vector<4x1024xf32>
    %1 = arith.truncf %0 : vector<4x1024xf32> to vector<4x1024xbf16>
    %c0_1 = arith.constant 0 : index
    %c0_2 = arith.constant 0 : index
    %2 = vector.load %arg1[%c0_1, %c0_2] : memref<1024x512xbf16, #tpu.memory_space<vmem>>, vector<1024x512xbf16>
    %cst = arith.constant dense<0.000000e+00> : vector<4x512xf32>
    %3 = tpu.matmul %1, %2, %cst {dimension_numbers = #tpu.dot_dimension_numbers<[1], [0], [0], [1], [0, 0, 1, 1], [], []>} : vector<4x1024xbf16>, vector<1024x512xbf16>, vector<4x512xf32> -> vector<4x512xf32>
    %4 = arith.negf %3 : vector<4x512xf32>
    %5 = math.exp %4 : vector<4x512xf32>
    %cst_3 = arith.constant 1.000000e+00 : f32
    %6 = vector.broadcast %cst_3 : f32 to vector<4x512xf32>
    %7 = arith.addf %6, %5 : vector<4x512xf32>
    %8 = arith.divf %6, %7 : vector<4x512xf32>
    %9 = arith.truncf %8 : vector<4x512xf32> to vector<4x512xbf16>
    %c0_4 = arith.constant 0 : index
    %c0_5 = arith.constant 0 : index
    %10 = vector.load %arg2[%c0_4, %c0_5] : memref<512x512xbf16, #tpu.memory_space<vmem>>, vector<512x512xbf16>
    %cst_6 = arith.constant dense<0.000000e+00> : vector<4x512xf32>
    %11 = tpu.matmul %9, %10, %cst_6 {dimension_numbers = #tpu.dot_dimension_numbers<[1], [0], [0], [1], [0, 0, 1, 1], [], []>} : vector<4x512xbf16>, vector<512x512xbf16>, vector<4x512xf32> -> vector<4x512xf32>
    %12 = arith.negf %11 : vector<4x512xf32>
    %13 = math.exp %12 : vector<4x512xf32>
    %cst_7 = arith.constant 1.000000e+00 : f32
    %14 = vector.broadcast %cst_7 : f32 to vector<4x512xf32>
    %15 = arith.addf %14, %13 : vector<4x512xf32>
    %16 = arith.divf %14, %15 : vector<4x512xf32>
    %c0_8 = arith.constant 0 : index
    %c0_9 = arith.constant 0 : index
    %17 = vector.load %arg3[%c0_8, %c0_9] : memref<4x512xf32, #tpu.memory_space<vmem>>, vector<4x512xf32>
    tpu.vector_store %arg3[%c0_8, %c0_9], %16 {strides = array<i32>} : memref<4x512xf32, #tpu.memory_space<vmem>>, vector<4x512xf32>,
    return
  }
}

</mosaic_0001>

<llo_original>
// kernel: contrastive_forward.1
$region0: #{contrastive_forward.1}
  #allocation0 [shape = 'u32[]', space=smem, size = 0x4, offset = 0x4, fixed_abs, tag = 'smem constant byte address 0x4 - core index']
  #allocation1 [shape = 'u32[144,128]{1,0:T(1,128)}', space=vmem, size = 0x12000, scoped, tag = 'internal scratch']
  %s0 = inlined_call_operand.vmem [shape: f32[4,1024], index: 0, kind: input, shape index: {}]
  %s1 = inlined_call_operand.hbm [shape: bf16[1024,512], index: 1, kind: input, shape index: {}]
  %s2 = inlined_call_operand.hbm [shape: bf16[512,512], index: 2, kind: input, shape index: {}]
  %s3 = inlined_call_operand.vmem [shape: f32[4,512], index: 3, kind: output, shape index: {}]
  %s4 = sld [smem:[#allocation0]]
  $region30: #{contrastive_forward.1} parent=0
    _
  %s6 = ssub.s32 1, %s4
  %s7 = scalar_select 0, %s6, %s4
  $region1: #{contrastive_forward.1} parent=0
    #allocation2 [shape = 'u8[1048576]{0}', space=vmem, size = 0x100000, scoped, tag = 'input window, operand 1, single buffered']
    #allocation3 [shape = 's32[1]{0}', space=sflag, size = 0x4, scoped, tag = 'scoped memory for contrastive_forward.1']
    #allocation4 [shape = 'u8[524288]{0}', space=vmem, size = 0x80000, scoped, tag = 'input window, operand 2, single buffered']
    #allocation5 [shape = 's32[1]{0}', space=sflag, size = 0x4, scoped, tag = 'scoped memory for contrastive_forward.1']
    %8 = vsyncpa [#allocation3], 0
    %9 = vsyncpa [#allocation5], 0
    // Predicated region
    $region2: #{contrastive_forward.1} parent=1 // pred_check
      _
    $region3: #{contrastive_forward.1} parent=1 // pred_check_branch
      %11 = sbr.rel (0) target = $region5
    $region4: #{contrastive_forward.1} parent=1 // pred_region
      _
    $region5: #{contrastive_forward.1} parent=1 // pred_fallthru
      _
    // Predicated region
    $region6: #{contrastive_forward.1} parent=1 // pred_check
      _
    $region7: #{contrastive_forward.1} parent=1 // pred_check_branch
      %13 = sbr.rel (0) target = $region9
    $region8: #{contrastive_forward.1} parent=1 // pred_region
      %s15 = ssub.s32 32768, 32768
      %16 = vsyncadd [#allocation3], %s15
      %s17 = sshll.u32 [#allocation2], 4
      %s18 = int_to_ptr.vmem [resolvable:$true] %s17
      %23 = dma.hbm_to_vmem [thread:$0]  %s1, 32768, %s18, [#allocation3], 256, 256, 16
    $region9: #{contrastive_forward.1} parent=1 // pred_fallthru
      _
    // Predicated region
    $region10: #{contrastive_forward.1} parent=1 // pred_check
      _
    $region11: #{contrastive_forward.1} parent=1 // pred_check_branch
      %25 = sbr.rel (0) target = $region13
    $region12: #{contrastive_forward.1} parent=1 // pred_region
      %s27 = ssub.s32 16384, 16384
      %28 = vsyncadd [#allocation5], %s27
      %s29 = sshll.u32 [#allocation4], 4
      %s30 = int_to_ptr.vmem [resolvable:$true] %s29
      %35 = dma.hbm_to_vmem [thread:$0]  %s2, 16384, %s30, [#allocation5], 256, 256, 16
    $region13: #{contrastive_forward.1} parent=1 // pred_fallthru
      _
    // Predicated region
    $region14: #{contrastive_forward.1} parent=1 // pred_check
      _
    $region15: #{contrastive_forward.1} parent=1 // pred_check_branch
      %37 = sbr.rel (0) target = $region17
    $region16: #{contrastive_forward.1} parent=1 // pred_region
      %38 = dma.done [#allocation3], 32768
    $region17: #{contrastive_forward.1} parent=1 // pred_fallthru
      _
    // Predicated region
    $region18: #{contrastive_forward.1} parent=1 // pred_check
      _
    $region19: #{contrastive_forward.1} parent=1 // pred_check_branch
      %40 = sbr.rel (0) target = $region21
    $region20: #{contrastive_forward.1} parent=1 // pred_region
      %41 = dma.done [#allocation5], 16384
    $region21: #{contrastive_forward.1} parent=1 // pred_fallthru
      _
    %v42 = vld [vmem:[%s0] sm:$0xff]
    %v43 = vld [vmem:[%s0 + $0x8] sm:$0xff]
    %v44 = vld [vmem:[%s0 + $0x10] sm:$0xff]
    %v45 = vld [vmem:[%s0 + $0x18] sm:$0xff]
    %v50 = vcombine.high %v42, %v42
    %v51 = vcombine.high %v43, %v43
    %v52 = vcombine.high %v44, %v44
    %v53 = vcombine.high %v45, %v45
    %v58 = vpack.c.bf16 %v42, %v42
    %v59 = vpack.c.bf16 %v50, %v50
    %v60 = vpack.c.bf16 %v43, %v43
    %v61 = vpack.c.bf16 %v51, %v51
    %v62 = vpack.c.bf16 %v44, %v44
    %v63 = vpack.c.bf16 %v52, %v52
    %v64 = vpack.c.bf16 %v45, %v45
    %v65 = vpack.c.bf16 %v53, %v53
    %v66 = vld [vmem:[#allocation2] sm:$0xff]
    %v67 = vld [vmem:[#allocation2 + $0x8] sm:$0xff]
    %v68 = vld [vmem:[#allocation2 + $0x10] sm:$0xff]
    %v69 = vld [vmem:[#allocation2 + $0x18] sm:$0xff]
    %v70 = vld [vmem:[#allocation2 + $0x20] sm:$0xff]
    %v71 = vld [vmem:[#allocation2 + $0x28] sm:$0xff]
    %v72 = vld [vmem:[#allocation2 + $0x30] sm:$0xff]
    %v73 = vld [vmem:[#allocation2 + $0x38] sm:$0xff]
    %v74 = vld [vmem:[#allocation2 + $0x40] sm:$0xff]
    %v75 = vld [vmem:[#allocation2 + $0x48] sm:$0xff]
    %v76 = vld [vmem:[#allocation2 + $0x50] sm:$0xff]
    %v77 = vld [vmem:[#allocation2 + $0x58] sm:$0xff]
    %v78 = vld [vmem:[#allocation2 + $0x60] sm:$0xff]
    %v79 = vld [vmem:[#allocation2 + $0x68] sm:$0xff]
    %v80 = vld [vmem:[#allocation2 + $0x70] sm:$0xff]
    %v81 = vld [vmem:[#allocation2 + $0x78] sm:$0xff]
    %v82 = vld [vmem:[#allocation2 + $0x80] sm:$0xff]
    %v83 = vld [vmem:[#allocation2 + $0x88] sm:$0xff]
    %v84 = vld [vmem:[#allocation2 + $0x90] sm:$0xff]
    %v85 = vld [vmem:[#allocation2 + $0x98] sm:$0xff]
    %v86 = vld [vmem:[#allocation2 + $0xa0] sm:$0xff]
    %v87 = vld [vmem:[#allocation2 + $0xa8] sm:$0xff]
    %v88 = vld [vmem:[#allocation2 + $0xb0] sm:$0xff]
    %v89 = vld [vmem:[#allocation2 + $0xb8] sm:$0xff]
    %v90 = vld [vmem:[#allocation2 + $0xc0] sm:$0xff]
    %v91 = vld [vmem:[#allocation2 + $0xc8] sm:$0xff]
    %v92 = vld [vmem:[#allocation2 + $0xd0] sm:$0xff]
    %v93 = vld [vmem:[#allocation2 + $0xd8] sm:$0xff]
    %v94 = vld [vmem:[#allocation2 + $0xe0] sm:$0xff]
    %v95 = vld [vmem:[#allocation2 + $0xe8] sm:$0xff]
    %v96 = vld [vmem:[#allocation2 + $0xf0] sm:$0xff]
    %v97 = vld [vmem:[#allocation2 + $0xf8] sm:$0xff]
    %v98 = vld [vmem:[#allocation2 + $0x100] sm:$0xff]
    %v99 = vld [vmem:[#allocation2 + $0x108] sm:$0xff]
    %v100 = vld [vmem:[#allocation2 + $0x110] sm:$0xff]
    %v101 = vld [vmem:[#allocation2 + $0x118] sm:$0xff]
    %v102 = vld [vmem:[#allocation2 + $0x120] sm:$0xff]
    %v103 = vld [vmem:[#allocation2 + $0x128] sm:$0xff]
    %v104 = vld [vmem:[#allocation2 + $0x130] sm:$0xff]
    %v105 = vld [vmem:[#allocation2 + $0x138] sm:$0xff]
    %v106 = vld [vmem:[#allocation2 + $0x140] sm:$0xff]
    %v107 = vld [vmem:[#allocation2 + $0x148] sm:$0xff]
    %v108 = vld [vmem:[#allocation2 + $0x150] sm:$0xff]
    %v109 = vld [vmem:[#allocation2 + $0x158] sm:$0xff]
    %v110 = vld [vmem:[#allocation2 + $0x160] sm:$0xff]
    %v111 = vld [vmem:[#allocation2 + $0x168] sm:$0xff]
    %v112 = vld [vmem:[#allocation2 + $0x170] sm:$0xff]
    %v113 = vld [vmem:[#allocation2 + $0x178] sm:$0xff]
    %v114 = vld [vmem:[#allocation2 + $0x180] sm:$0xff]
    %v115 = vld [vmem:[#allocation2 + $0x188] sm:$0xff]
    %v116 = vld [vmem:[#allocation2 + $0x190] sm:$0xff]
    %v117 = vld [vmem:[#allocation2 + $0x198] sm:$0xff]
    %v118 = vld [vmem:[#allocation2 + $0x1a0] sm:$0xff]
    %v119 = vld [vmem:[#allocation2 + $0x1a8] sm:$0xff]
    %v120 = vld [vmem:[#allocation2 + $0x1b0] sm:$0xff]
    %v121 = vld [vmem:[#allocation2 + $0x1b8] sm:$0xff]
    %v122 = vld [vmem:[#allocation2 + $0x1c0] sm:$0xff]
    %v123 = vld [vmem:[#allocation2 + $0x1c8] sm:$0xff]
    %v124 = vld [vmem:[#allocation2 + $0x1d0] sm:$0xff]
    %v125 = vld [vmem:[#allocation2 + $0x1d8] sm:$0xff]
    %v126 = vld [vmem:[#allocation2 + $0x1e0] sm:$0xff]
    %v127 = vld [vmem:[#allocation2 + $0x1e8] sm:$0xff]
    %v128 = vld [vmem:[#allocation2 + $0x1f0] sm:$0xff]
    %v129 = vld [vmem:[#allocation2 + $0x1f8] sm:$0xff]
    %v130 = vld [vmem:[#allocation2 + $0x200] sm:$0xff]
    %v131 = vld [vmem:[#allocation2 + $0x208] sm:$0xff]
    %v132 = vld [vmem:[#allocation2 + $0x210] sm:$0xff]
    %v133 = vld [vmem:[#allocation2 + $0x218] sm:$0xff]
    %v134 = vld [vmem:[#allocation2 + $0x220] sm:$0xff]
    %v135 = vld [vmem:[#allocation2 + $0x228] sm:$0xff]
    %v136 = vld [vmem:[#allocation2 + $0x230] sm:$0xff]
    %v137 = vld [vmem:[#allocation2 + $0x238] sm:$0xff]
    %v138 = vld [vmem:[#allocation2 + $0x240] sm:$0xff]
    %v139 = vld [vmem:[#allocation2 + $0x248] sm:$0xff]
    %v140 = vld [vmem:[#allocation2 + $0x250] sm:$0xff]
    %v141 = vld [vmem:[#allocation2 + $0x258] sm:$0xff]
    %v142 = vld [vmem:[#allocation2 + $0x260] sm:$0xff]
    %v143 = vld [vmem:[#allocation2 + $0x268] sm:$0xff]
    %v144 = vld [vmem:[#allocation2 + $0x270] sm:$0xff]
    %v145 = vld [vmem:[#allocation2 + $0x278] sm:$0xff]
    %v146 = vld [vmem:[#allocation2 + $0x280] sm:$0xff]
    %v147 = vld [vmem:[#allocation2 + $0x288] sm:$0xff]
    %v148 = vld [vmem:[#allocation2 + $0x290] sm:$0xff]
    %v149 = vld [vmem:[#allocation2 + $0x298] sm:$0xff]
    %v150 = vld [vmem:[#allocation2 + $0x2a0] sm:$0xff]
    %v151 = vld [vmem:[#allocation2 + $0x2a8] sm:$0xff]
    %v152 = vld [vmem:[#allocation2 + $0x2b0] sm:$0xff]
    %v153 = vld [vmem:[#allocation2 + $0x2b8] sm:$0xff]
    %v154 = vld [vmem:[#allocation2 + $0x2c0] sm:$0xff]
    %v155 = vld [vmem:[#allocation2 + $0x2c8] sm:$0xff]
    %v156 = vld [vmem:[#allocation2 + $0x2d0] sm:$0xff]
    %v157 = vld [vmem:[#allocation2 + $0x2d8] sm:$0xff]
    %v158 = vld [vmem:[#allocation2 + $0x2e0] sm:$0xff]
    %v159 = vld [vmem:[#allocation2 + $0x2e8] sm:$0xff]
    %v160 = vld [vmem:[#allocation2 + $0x2f0] sm:$0xff]
    %v161 = vld [vmem:[#allocation2 + $0x2f8] sm:$0xff]
    %v162 = vld [vmem:[#allocation2 + $0x300] sm:$0xff]
    %v163 = vld [vmem:[#allocation2 + $0x308] sm:$0xff]
    %v164 = vld [vmem:[#allocation2 + $0x310] sm:$0xff]
    %v165 = vld [vmem:[#allocation2 + $0x318] sm:$0xff]
    %v166 = vld [vmem:[#allocation2 + $0x320] sm:$0xff]
    %v167 = vld [vmem:[#allocation2 + $0x328] sm:$0xff]
    %v168 = vld [vmem:[#allocation2 + $0x330] sm:$0xff]
    %v169 = vld [vmem:[#allocation2 + $0x338] sm:$0xff]
    %v170 = vld [vmem:[#allocation2 + $0x340] sm:$0xff]
    %v171 = vld [vmem:[#allocation2 + $0x348] sm:$0xff]
    %v172 = vld [vmem:[#allocation2 + $0x350] sm:$0xff]
    %v173 = vld [vmem:[#allocation2 + $0x358] sm:$0xff]
    %v174 = vld [vmem:[#allocation2 + $0x360] sm:$0xff]
    %v175 = vld [vmem:[#allocation2 + $0x368] sm:$0xff]
    %v176 = vld [vmem:[#allocation2 + $0x370] sm:$0xff]
    %v177 = vld [vmem:[#allocation2 + $0x378] sm:$0xff]
    %v178 = vld [vmem:[#allocation2 + $0x380] sm:$0xff]
    %v179 = vld [vmem:[#allocation2 + $0x388] sm:$0xff]
    %v180 = vld [vmem:[#allocation2 + $0x390] sm:$0xff]
    %v181 = vld [vmem:[#allocation2 + $0x398] sm:$0xff]
    %v182 = vld [vmem:[#allocation2 + $0x3a0] sm:$0xff]
    %v183 = vld [vmem:[#allocation2 + $0x3a8] sm:$0xff]
    %v184 = vld [vmem:[#allocation2 + $0x3b0] sm:$0xff]
    %v185 = vld [vmem:[#allocation2 + $0x3b8] sm:$0xff]
    %v186 = vld [vmem:[#allocation2 + $0x3c0] sm:$0xff]
    %v187 = vld [vmem:[#allocation2 + $0x3c8] sm:$0xff]
    %v188 = vld [vmem:[#allocation2 + $0x3d0] sm:$0xff]
    %v189 = vld [vmem:[#allocation2 + $0x3d8] sm:$0xff]
    %v190 = vld [vmem:[#allocation2 + $0x3e0] sm:$0xff]
    %v191 = vld [vmem:[#allocation2 + $0x3e8] sm:$0xff]
    %v192 = vld [vmem:[#allocation2 + $0x3f0] sm:$0xff]
    %v193 = vld [vmem:[#allocation2 + $0x3f8] sm:$0xff]
    %v194 = vld [vmem:[#allocation2 + $0x400] sm:$0xff]
    %v195 = vld [vmem:[#allocation2 + $0x408] sm:$0xff]
    %v196 = vld [vmem:[#allocation2 + $0x410] sm:$0xff]
    %v197 = vld [vmem:[#allocation2 + $0x418] sm:$0xff]
    %v198 = vld [vmem:[#allocation2 + $0x420] sm:$0xff]
    %v199 = vld [vmem:[#allocation2 + $0x428] sm:$0xff]
    %v200 = vld [vmem:[#allocation2 + $0x430] sm:$0xff]
    %v201 = vld [vmem:[#allocation2 + $0x438] sm:$0xff]
    %v202 = vld [vmem:[#allocation2 + $0x440] sm:$0xff]
    %v203 = vld [vmem:[#allocation2 + $0x448] sm:$0xff]
    %v204 = vld [vmem:[#allocation2 + $0x450] sm:$0xff]
    %v205 = vld [vmem:[#allocation2 + $0x458] sm:$0xff]
    %v206 = vld [vmem:[#allocation2 + $0x460] sm:$0xff]
    %v207 = vld [vmem:[#allocation2 + $0x468] sm:$0xff]
    %v208 = vld [vmem:[#allocation2 + $0x470] sm:$0xff]
    %v209 = vld [vmem:[#allocation2 + $0x478] sm:$0xff]
    %v210 = vld [vmem:[#allocation2 + $0x480] sm:$0xff]
    %v211 = vld [vmem:[#allocation2 + $0x488] sm:$0xff]
    %v212 = vld [vmem:[#allocation2 + $0x490] sm:$0xff]
    %v213 = vld [vmem:[#allocation2 + $0x498] sm:$0xff]
    %v214 = vld [vmem:[#allocation2 + $0x4a0] sm:$0xff]
    %v215 = vld [vmem:[#allocation2 + $0x4a8] sm:$0xff]
    %v216 = vld [vmem:[#allocation2 + $0x4b0] sm:$0xff]
    %v217 = vld [vmem:[#allocation2 + $0x4b8] sm:$0xff]
    %v218 = vld [vmem:[#allocation2 + $0x4c0] sm:$0xff]
    %v219 = vld [vmem:[#allocation2 + $0x4c8] sm:$0xff]
    %v220 = vld [vmem:[#allocation2 + $0x4d0] sm:$0xff]
    %v221 = vld [vmem:[#allocation2 + $0x4d8] sm:$0xff]
    %v222 = vld [vmem:[#allocation2 + $0x4e0] sm:$0xff]
    %v223 = vld [vmem:[#allocation2 + $0x4e8] sm:$0xff]
    %v224 = vld [vmem:[#allocation2 + $0x4f0] sm:$0xff]
    %v225 = vld [vmem:[#allocation2 + $0x4f8] sm:$0xff]
    %v226 = vld [vmem:[#allocation2 + $0x500] sm:$0xff]
    %v227 = vld [vmem:[#allocation2 + $0x508] sm:$0xff]
    %v228 = vld [vmem:[#allocation2 + $0x510] sm:$0xff]
    %v229 = vld [vmem:[#allocation2 + $0x518] sm:$0xff]
    %v230 = vld [vmem:[#allocation2 + $0x520] sm:$0xff]
    %v231 = vld [vmem:[#allocation2 + $0x528] sm:$0xff]
    %v232 = vld [vmem:[#allocation2 + $0x530] sm:$0xff]
    %v233 = vld [vmem:[#allocation2 + $0x538] sm:$0xff]
    %v234 = vld [vmem:[#allocation2 + $0x540] sm:$0xff]
    %v235 = vld [vmem:[#allocation2 + $0x548] sm:$0xff]
    %v236 = vld [vmem:[#allocation2 + $0x550] sm:$0xff]
    %v237 = vld [vmem:[#allocation2 + $0x558] sm:$0xff]
    %v238 = vld [vmem:[#allocation2 + $0x560] sm:$0xff]
    %v239 = vld [vmem:[#allocation2 + $0x568] sm:$0xff]
    %v240 = vld [vmem:[#allocation2 + $0x570] sm:$0xff]
    %v241 = vld [vmem:[#allocation2 + $0x578] sm:$0xff]
    %v242 = vld [vmem:[#allocation2 + $0x580] sm:$0xff]
    %v243 = vld [vmem:[#allocation2 + $0x588] sm:$0xff]
    %v244 = vld [vmem:[#allocation2 + $0x590] sm:$0xff]
    %v245 = vld [vmem:[#allocation2 + $0x598] sm:$0xff]
    %v246 = vld [vmem:[#allocation2 + $0x5a0] sm:$0xff]
    %v247 = vld [vmem:[#allocation2 + $0x5a8] sm:$0xff]
    %v248 = vld [vmem:[#allocation2 + $0x5b0] sm:$0xff]
    %v249 = vld [vmem:[#allocation2 + $0x5b8] sm:$0xff]
    %v250 = vld [vmem:[#allocation2 + $0x5c0] sm:$0xff]
    %v251 = vld [vmem:[#allocation2 + $0x5c8] sm:$0xff]
    %v252 = vld [vmem:[#allocation2 + $0x5d0] sm:$0xff]
    %v253 = vld [vmem:[#allocation2 + $0x5d8] sm:$0xff]
    %v254 = vld [vmem:[#allocation2 + $0x5e0] sm:$0xff]
    %v255 = vld [vmem:[#allocation2 + $0x5e8] sm:$0xff]
    %v256 = vld [vmem:[#allocation2 + $0x5f0] sm:$0xff]
    %v257 = vld [vmem:[#allocation2 + $0x5f8] sm:$0xff]
    %v258 = vld [vmem:[#allocation2 + $0x600] sm:$0xff]
    %v259 = vld [vmem:[#allocation2 + $0x608] sm:$0xff]
    %v260 = vld [vmem:[#allocation2 + $0x610] sm:$0xff]
    %v261 = vld [vmem:[#allocation2 + $0x618] sm:$0xff]
    %v262 = vld [vmem:[#allocation2 + $0x620] sm:$0xff]
    %v263 = vld [vmem:[#allocation2 + $0x628] sm:$0xff]
    %v264 = vld [vmem:[#allocation2 + $0x630] sm:$0xff]
    %v265 = vld [vmem:[#allocation2 + $0x638] sm:$0xff]
    %v266 = vld [vmem:[#allocation2 + $0x640] sm:$0xff]
    %v267 = vld [vmem:[#allocation2 + $0x648] sm:$0xff]
    %v268 = vld [vmem:[#allocation2 + $0x650] sm:$0xff]
    %v269 = vld [vmem:[#allocation2 + $0x658] sm:$0xff]
    %v270 = vld [vmem:[#allocation2 + $0x660] sm:$0xff]
    %v271 = vld [vmem:[#allocation2 + $0x668] sm:$0xff]
    %v272 = vld [vmem:[#allocation2 + $0x670] sm:$0xff]
    %v273 = vld [vmem:[#allocation2 + $0x678] sm:$0xff]
    %v274 = vld [vmem:[#allocation2 + $0x680] sm:$0xff]
    %v275 = vld [vmem:[#allocation2 + $0x688] sm:$0xff]
    %v276 = vld [vmem:[#allocation2 + $0x690] sm:$0xff]
    %v277 = vld [vmem:[#allocation2 + $0x698] sm:$0xff]
    %v278 = vld [vmem:[#allocation2 + $0x6a0] sm:$0xff]
    %v279 = vld [vmem:[#allocation2 + $0x6a8] sm:$0xff]
    %v280 = vld [vmem:[#allocation2 + $0x6b0] sm:$0xff]
    %v281 = vld [vmem:[#allocation2 + $0x6b8] sm:$0xff]
    %v282 = vld [vmem:[#allocation2 + $0x6c0] sm:$0xff]
    %v283 = vld [vmem:[#allocation2 + $0x6c8] sm:$0xff]
    %v284 = vld [vmem:[#allocation2 + $0x6d0] sm:$0xff]
    %v285 = vld [vmem:[#allocation2 + $0x6d8] sm:$0xff]
    %v286 = vld [vmem:[#allocation2 + $0x6e0] sm:$0xff]
    %v287 = vld [vmem:[#allocation2 + $0x6e8] sm:$0xff]
    %v288 = vld [vmem:[#allocation2 + $0x6f0] sm:$0xff]
    %v289 = vld [vmem:[#allocation2 + $0x6f8] sm:$0xff]
    %v290 = vld [vmem:[#allocation2 + $0x700] sm:$0xff]
    %v291 = vld [vmem:[#allocation2 + $0x708] sm:$0xff]
    %v292 = vld [vmem:[#allocation2 + $0x710] sm:$0xff]
    %v293 = vld [vmem:[#allocation2 + $0x718] sm:$0xff]
    %v294 = vld [vmem:[#allocation2 + $0x720] sm:$0xff]
    %v295 = vld [vmem:[#allocation2 + $0x728] sm:$0xff]
    %v296 = vld [vmem:[#allocation2 + $0x730] sm:$0xff]
    %v297 = vld [vmem:[#allocation2 + $0x738] sm:$0xff]
    %v298 = vld [vmem:[#allocation2 + $0x740] sm:$0xff]
    %v299 = vld [vmem:[#allocation2 + $0x748] sm:$0xff]
    %v300 = vld [vmem:[#allocation2 + $0x750] sm:$0xff]
    %v301 = vld [vmem:[#allocation2 + $0x758] sm:$0xff]
    %v302 = vld [vmem:[#allocation2 + $0x760] sm:$0xff]
    %v303 = vld [vmem:[#allocation2 + $0x768] sm:$0xff]
    %v304 = vld [vmem:[#allocation2 + $0x770] sm:$0xff]
    %v305 = vld [vmem:[#allocation2 + $0x778] sm:$0xff]
    %v306 = vld [vmem:[#allocation2 + $0x780] sm:$0xff]
    %v307 = vld [vmem:[#allocation2 + $0x788] sm:$0xff]
    %v308 = vld [vmem:[#allocation2 + $0x790] sm:$0xff]
    %v309 = vld [vmem:[#allocation2 + $0x798] sm:$0xff]
    %v310 = vld [vmem:[#allocation2 + $0x7a0] sm:$0xff]
    %v311 = vld [vmem:[#allocation2 + $0x7a8] sm:$0xff]
    %v312 = vld [vmem:[#allocation2 + $0x7b0] sm:$0xff]
    %v313 = vld [vmem:[#allocation2 + $0x7b8] sm:$0xff]
    %v314 = vld [vmem:[#allocation2 + $0x7c0] sm:$0xff]
    %v315 = vld [vmem:[#allocation2 + $0x7c8] sm:$0xff]
    %v316 = vld [vmem:[#allocation2 + $0x7d0] sm:$0xff]
    %v317 = vld [vmem:[#allocation2 + $0x7d8] sm:$0xff]
    %v318 = vld [vmem:[#allocation2 + $0x7e0] sm:$0xff]
    %v319 = vld [vmem:[#allocation2 + $0x7e8] sm:$0xff]
    %v320 = vld [vmem:[#allocation2 + $0x7f0] sm:$0xff]
    %v321 = vld [vmem:[#allocation2 + $0x7f8] sm:$0xff]
    %v578 = vunpack.c.l.b16 %v66
    %v579 = vunpack.c.h.b16 %v66
    %v580 = vunpack.c.l.b16 %v67
    %v581 = vunpack.c.h.b16 %v67
    %v582 = vunpack.c.l.b16 %v68
    %v583 = vunpack.c.h.b16 %v68
    %v584 = vunpack.c.l.b16 %v69
    %v585 = vunpack.c.h.b16 %v69
    %v586 = vunpack.c.l.b16 %v70
    %v587 = vunpack.c.h.b16 %v70
    %v588 = vunpack.c.l.b16 %v71
    %v589 = vunpack.c.h.b16 %v71
    %v590 = vunpack.c.l.b16 %v72
    %v591 = vunpack.c.h.b16 %v72
    %v592 = vunpack.c.l.b16 %v73
    %v593 = vunpack.c.h.b16 %v73
    %v594 = vunpack.c.l.b16 %v74
    %v595 = vunpack.c.h.b16 %v74
    %v596 = vunpack.c.l.b16 %v75
    %v597 = vunpack.c.h.b16 %v75
    %v598 = vunpack.c.l.b16 %v76
    %v599 = vunpack.c.h.b16 %v76
    %v600 = vunpack.c.l.b16 %v77
    %v601 = vunpack.c.h.b16 %v77
    %v602 = vunpack.c.l.b16 %v78
    %v603 = vunpack.c.h.b16 %v78
    %v604 = vunpack.c.l.b16 %v79
    %v605 = vunpack.c.h.b16 %v79
    %v606 = vunpack.c.l.b16 %v80
    %v607 = vunpack.c.h.b16 %v80
    %v608 = vunpack.c.l.b16 %v81
    %v609 = vunpack.c.h.b16 %v81
    %v610 = vunpack.c.l.b16 %v82
    %v611 = vunpack.c.h.b16 %v82
    %v612 = vunpack.c.l.b16 %v83
    %v613 = vunpack.c.h.b16 %v83
    %v614 = vunpack.c.l.b16 %v84
    %v615 = vunpack.c.h.b16 %v84
    %v616 = vunpack.c.l.b16 %v85
    %v617 = vunpack.c.h.b16 %v85
    %v618 = vunpack.c.l.b16 %v86
    %v619 = vunpack.c.h.b16 %v86
    %v620 = vunpack.c.l.b16 %v87
    %v621 = vunpack.c.h.b16 %v87
    %v622 = vunpack.c.l.b16 %v88
    %v623 = vunpack.c.h.b16 %v88
    %v624 = vunpack.c.l.b16 %v89
    %v625 = vunpack.c.h.b16 %v89
    %v626 = vunpack.c.l.b16 %v90
    %v627 = vunpack.c.h.b16 %v90
    %v628 = vunpack.c.l.b16 %v91
    %v629 = vunpack.c.h.b16 %v91
    %v630 = vunpack.c.l.b16 %v92
    %v631 = vunpack.c.h.b16 %v92
    %v632 = vunpack.c.l.b16 %v93
    %v633 = vunpack.c.h.b16 %v93
    %v634 = vunpack.c.l.b16 %v94
    %v635 = vunpack.c.h.b16 %v94
    %v636 = vunpack.c.l.b16 %v95
    %v637 = vunpack.c.h.b16 %v95
    %v638 = vunpack.c.l.b16 %v96
    %v639 = vunpack.c.h.b16 %v96
    %v640 = vunpack.c.l.b16 %v97
    %v641 = vunpack.c.h.b16 %v97
    %v642 = vunpack.c.l.b16 %v98
    %v643 = vunpack.c.h.b16 %v98
    %v644 = vunpack.c.l.b16 %v99
    %v645 = vunpack.c.h.b16 %v99
    %v646 = vunpack.c.l.b16 %v100
    %v647 = vunpack.c.h.b16 %v100
    %v648 = vunpack.c.l.b16 %v101
    %v649 = vunpack.c.h.b16 %v101
    %v650 = vunpack.c.l.b16 %v102
    %v651 = vunpack.c.h.b16 %v102
    %v652 = vunpack.c.l.b16 %v103
    %v653 = vunpack.c.h.b16 %v103
    %v654 = vunpack.c.l.b16 %v104
    %v655 = vunpack.c.h.b16 %v104
    %v656 = vunpack.c.l.b16 %v105
    %v657 = vunpack.c.h.b16 %v105
    %v658 = vunpack.c.l.b16 %v106
    %v659 = vunpack.c.h.b16 %v106
    %v660 = vunpack.c.l.b16 %v107
    %v661 = vunpack.c.h.b16 %v107
    %v662 = vunpack.c.l.b16 %v108
    %v663 = vunpack.c.h.b16 %v108
    %v664 = vunpack.c.l.b16 %v109
    %v665 = vunpack.c.h.b16 %v109
    %v666 = vunpack.c.l.b16 %v110
    %v667 = vunpack.c.h.b16 %v110
    %v668 = vunpack.c.l.b16 %v111
    %v669 = vunpack.c.h.b16 %v111
    %v670 = vunpack.c.l.b16 %v112
    %v671 = vunpack.c.h.b16 %v112
    %v672 = vunpack.c.l.b16 %v113
    %v673 = vunpack.c.h.b16 %v113
    %v674 = vunpack.c.l.b16 %v114
    %v675 = vunpack.c.h.b16 %v114
    %v676 = vunpack.c.l.b16 %v115
    %v677 = vunpack.c.h.b16 %v115
    %v678 = vunpack.c.l.b16 %v116
    %v679 = vunpack.c.h.b16 %v116
    %v680 = vunpack.c.l.b16 %v117
    %v681 = vunpack.c.h.b16 %v117
    %v682 = vunpack.c.l.b16 %v118
    %v683 = vunpack.c.h.b16 %v118
    %v684 = vunpack.c.l.b16 %v119
    %v685 = vunpack.c.h.b16 %v119
    %v686 = vunpack.c.l.b16 %v120
    %v687 = vunpack.c.h.b16 %v120
    %v688 = vunpack.c.l.b16 %v121
    %v689 = vunpack.c.h.b16 %v121
    %v690 = vunpack.c.l.b16 %v122
    %v691 = vunpack.c.h.b16 %v122
    %v692 = vunpack.c.l.b16 %v123
    %v693 = vunpack.c.h.b16 %v123
    %v694 = vunpack.c.l.b16 %v124
    %v695 = vunpack.c.h.b16 %v124
    %v696 = vunpack.c.l.b16 %v125
    %v697 = vunpack.c.h.b16 %v125
    %v698 = vunpack.c.l.b16 %v126
    %v699 = vunpack.c.h.b16 %v126
    %v700 = vunpack.c.l.b16 %v127
    %v701 = vunpack.c.h.b16 %v127
    %v702 = vunpack.c.l.b16 %v128
    %v703 = vunpack.c.h.b16 %v128
    %v704 = vunpack.c.l.b16 %v129
    %v705 = vunpack.c.h.b16 %v129
    %v706 = vunpack.c.l.b16 %v130
    %v707 = vunpack.c.h.b16 %v130
    %v708 = vunpack.c.l.b16 %v131
    %v709 = vunpack.c.h.b16 %v131
    %v710 = vunpack.c.l.b16 %v132
    %v711 = vunpack.c.h.b16 %v132
    %v712 = vunpack.c.l.b16 %v133
    %v713 = vunpack.c.h.b16 %v133
    %v714 = vunpack.c.l.b16 %v134
    %v715 = vunpack.c.h.b16 %v134
    %v716 = vunpack.c.l.b16 %v135
    %v717 = vunpack.c.h.b16 %v135
    %v718 = vunpack.c.l.b16 %v136
    %v719 = vunpack.c.h.b16 %v136
    %v720 = vunpack.c.l.b16 %v137
    %v721 = vunpack.c.h.b16 %v137
    %v722 = vunpack.c.l.b16 %v138
    %v723 = vunpack.c.h.b16 %v138
    %v724 = vunpack.c.l.b16 %v139
    %v725 = vunpack.c.h.b16 %v139
    %v726 = vunpack.c.l.b16 %v140
    %v727 = vunpack.c.h.b16 %v140
    %v728 = vunpack.c.l.b16 %v141
    %v729 = vunpack.c.h.b16 %v141
    %v730 = vunpack.c.l.b16 %v142
    %v731 = vunpack.c.h.b16 %v142
    %v732 = vunpack.c.l.b16 %v143
    %v733 = vunpack.c.h.b16 %v143
    %v734 = vunpack.c.l.b16 %v144
    %v735 = vunpack.c.h.b16 %v144
    %v736 = vunpack.c.l.b16 %v145
    %v737 = vunpack.c.h.b16 %v145
    %v738 = vunpack.c.l.b16 %v146
    %v739 = vunpack.c.h.b16 %v146
    %v740 = vunpack.c.l.b16 %v147
    %v741 = vunpack.c.h.b16 %v147
    %v742 = vunpack.c.l.b16 %v148
    %v743 = vunpack.c.h.b16 %v148
    %v744 = vunpack.c.l.b16 %v149
    %v745 = vunpack.c.h.b16 %v149
    %v746 = vunpack.c.l.b16 %v150
    %v747 = vunpack.c.h.b16 %v150
    %v748 = vunpack.c.l.b16 %v151
    %v749 = vunpack.c.h.b16 %v151
    %v750 = vunpack.c.l.b16 %v152
    %v751 = vunpack.c.h.b16 %v152
    %v752 = vunpack.c.l.b16 %v153
    %v753 = vunpack.c.h.b16 %v153
    %v754 = vunpack.c.l.b16 %v154
    %v755 = vunpack.c.h.b16 %v154
    %v756 = vunpack.c.l.b16 %v155
    %v757 = vunpack.c.h.b16 %v155
    %v758 = vunpack.c.l.b16 %v156
    %v759 = vunpack.c.h.b16 %v156
    %v760 = vunpack.c.l.b16 %v157
    %v761 = vunpack.c.h.b16 %v157
    %v762 = vunpack.c.l.b16 %v158
    %v763 = vunpack.c.h.b16 %v158
    %v764 = vunpack.c.l.b16 %v159
    %v765 = vunpack.c.h.b16 %v159
    %v766 = vunpack.c.l.b16 %v160
    %v767 = vunpack.c.h.b16 %v160
    %v768 = vunpack.c.l.b16 %v161
    %v769 = vunpack.c.h.b16 %v161
    %v770 = vunpack.c.l.b16 %v162
    %v771 = vunpack.c.h.b16 %v162
    %v772 = vunpack.c.l.b16 %v163
    %v773 = vunpack.c.h.b16 %v163
    %v774 = vunpack.c.l.b16 %v164
    %v775 = vunpack.c.h.b16 %v164
    %v776 = vunpack.c.l.b16 %v165
    %v777 = vunpack.c.h.b16 %v165
    %v778 = vunpack.c.l.b16 %v166
    %v779 = vunpack.c.h.b16 %v166
    %v780 = vunpack.c.l.b16 %v167
    %v781 = vunpack.c.h.b16 %v167
    %v782 = vunpack.c.l.b16 %v168
    %v783 = vunpack.c.h.b16 %v168
    %v784 = vunpack.c.l.b16 %v169
    %v785 = vunpack.c.h.b16 %v169
    %v786 = vunpack.c.l.b16 %v170
    %v787 = vunpack.c.h.b16 %v170
    %v788 = vunpack.c.l.b16 %v171
    %v789 = vunpack.c.h.b16 %v171
    %v790 = vunpack.c.l.b16 %v172
    %v791 = vunpack.c.h.b16 %v172
    %v792 = vunpack.c.l.b16 %v173
    %v793 = vunpack.c.h.b16 %v173
    %v794 = vunpack.c.l.b16 %v174
    %v795 = vunpack.c.h.b16 %v174
    %v796 = vunpack.c.l.b16 %v175
    %v797 = vunpack.c.h.b16 %v175
    %v798 = vunpack.c.l.b16 %v176
    %v799 = vunpack.c.h.b16 %v176
    %v800 = vunpack.c.l.b16 %v177
    %v801 = vunpack.c.h.b16 %v177
    %v802 = vunpack.c.l.b16 %v178
    %v803 = vunpack.c.h.b16 %v178
    %v804 = vunpack.c.l.b16 %v179
    %v805 = vunpack.c.h.b16 %v179
    %v806 = vunpack.c.l.b16 %v180
    %v807 = vunpack.c.h.b16 %v180
    %v808 = vunpack.c.l.b16 %v181
    %v809 = vunpack.c.h.b16 %v181
    %v810 = vunpack.c.l.b16 %v182
    %v811 = vunpack.c.h.b16 %v182
    %v812 = vunpack.c.l.b16 %v183
    %v813 = vunpack.c.h.b16 %v183
    %v814 = vunpack.c.l.b16 %v184
    %v815 = vunpack.c.h.b16 %v184
    %v816 = vunpack.c.l.b16 %v185
    %v817 = vunpack.c.h.b16 %v185
    %v818 = vunpack.c.l.b16 %v186
    %v819 = vunpack.c.h.b16 %v186
    %v820 = vunpack.c.l.b16 %v187
    %v821 = vunpack.c.h.b16 %v187
    %v822 = vunpack.c.l.b16 %v188
    %v823 = vunpack.c.h.b16 %v188
    %v824 = vunpack.c.l.b16 %v189
    %v825 = vunpack.c.h.b16 %v189
    %v826 = vunpack.c.l.b16 %v190
    %v827 = vunpack.c.h.b16 %v190
    %v828 = vunpack.c.l.b16 %v191
    %v829 = vunpack.c.h.b16 %v191
    %v830 = vunpack.c.l.b16 %v192
    %v831 = vunpack.c.h.b16 %v192
    %v832 = vunpack.c.l.b16 %v193
    %v833 = vunpack.c.h.b16 %v193
    %v834 = vunpack.c.l.b16 %v194
    %v835 = vunpack.c.h.b16 %v194
    %v836 = vunpack.c.l.b16 %v195
    %v837 = vunpack.c.h.b16 %v195
    %v838 = vunpack.c.l.b16 %v196
    %v839 = vunpack.c.h.b16 %v196
    %v840 = vunpack.c.l.b16 %v197
    %v841 = vunpack.c.h.b16 %v197
    %v842 = vunpack.c.l.b16 %v198
    %v843 = vunpack.c.h.b16 %v198
    %v844 = vunpack.c.l.b16 %v199
    %v845 = vunpack.c.h.b16 %v199
    %v846 = vunpack.c.l.b16 %v200
    %v847 = vunpack.c.h.b16 %v200
    %v848 = vunpack.c.l.b16 %v201
    %v849 = vunpack.c.h.b16 %v201
    %v850 = vunpack.c.l.b16 %v202
    %v851 = vunpack.c.h.b16 %v202
    %v852 = vunpack.c.l.b16 %v203
    %v853 = vunpack.c.h.b16 %v203
    %v854 = vunpack.c.l.b16 %v204
    %v855 = vunpack.c.h.b16 %v204
    %v856 = vunpack.c.l.b16 %v205
    %v857 = vunpack.c.h.b16 %v205
    %v858 = vunpack.c.l.b16 %v206
    %v859 = vunpack.c.h.b16 %v206
    %v860 = vunpack.c.l.b16 %v207
    %v861 = vunpack.c.h.b16 %v207
    %v862 = vunpack.c.l.b16 %v208
    %v863 = vunpack.c.h.b16 %v208
    %v864 = vunpack.c.l.b16 %v209
    %v865 = vunpack.c.h.b16 %v209
    %v866 = vunpack.c.l.b16 %v210
    %v867 = vunpack.c.h.b16 %v210
    %v868 = vunpack.c.l.b16 %v211
    %v869 = vunpack.c.h.b16 %v211
    %v870 = vunpack.c.l.b16 %v212
    %v871 = vunpack.c.h.b16 %v212
    %v872 = vunpack.c.l.b16 %v213
    %v873 = vunpack.c.h.b16 %v213
    %v874 = vunpack.c.l.b16 %v214
    %v875 = vunpack.c.h.b16 %v214
    %v876 = vunpack.c.l.b16 %v215
    %v877 = vunpack.c.h.b16 %v215
    %v878 = vunpack.c.l.b16 %v216
    %v879 = vunpack.c.h.b16 %v216
    %v880 = vunpack.c.l.b16 %v217
    %v881 = vunpack.c.h.b16 %v217
    %v882 = vunpack.c.l.b16 %v218
    %v883 = vunpack.c.h.b16 %v218
    %v884 = vunpack.c.l.b16 %v219
    %v885 = vunpack.c.h.b16 %v219
    %v886 = vunpack.c.l.b16 %v220
    %v887 = vunpack.c.h.b16 %v220
    %v888 = vunpack.c.l.b16 %v221
    %v889 = vunpack.c.h.b16 %v221
    %v890 = vunpack.c.l.b16 %v222
    %v891 = vunpack.c.h.b16 %v222
    %v892 = vunpack.c.l.b16 %v223
    %v893 = vunpack.c.h.b16 %v223
    %v894 = vunpack.c.l.b16 %v224
    %v895 = vunpack.c.h.b16 %v224
    %v896 = vunpack.c.l.b16 %v225
    %v897 = vunpack.c.h.b16 %v225
    %v898 = vunpack.c.l.b16 %v226
    %v899 = vunpack.c.h.b16 %v226
    %v900 = vunpack.c.l.b16 %v227
    %v901 = vunpack.c.h.b16 %v227
    %v902 = vunpack.c.l.b16 %v228
    %v903 = vunpack.c.h.b16 %v228
    %v904 = vunpack.c.l.b16 %v229
    %v905 = vunpack.c.h.b16 %v229
    %v906 = vunpack.c.l.b16 %v230
    %v907 = vunpack.c.h.b16 %v230
    %v908 = vunpack.c.l.b16 %v231
    %v909 = vunpack.c.h.b16 %v231
    %v910 = vunpack.c.l.b16 %v232
    %v911 = vunpack.c.h.b16 %v232
    %v912 = vunpack.c.l.b16 %v233
    %v913 = vunpack.c.h.b16 %v233
    %v914 = vunpack.c.l.b16 %v234
    %v915 = vunpack.c.h.b16 %v234
    %v916 = vunpack.c.l.b16 %v235
    %v917 = vunpack.c.h.b16 %v235
    %v918 = vunpack.c.l.b16 %v236
    %v919 = vunpack.c.h.b16 %v236
    %v920 = vunpack.c.l.b16 %v237
    %v921 = vunpack.c.h.b16 %v237
    %v922 = vunpack.c.l.b16 %v238
    %v923 = vunpack.c.h.b16 %v238
    %v924 = vunpack.c.l.b16 %v239
    %v925 = vunpack.c.h.b16 %v239
    %v926 = vunpack.c.l.b16 %v240
    %v927 = vunpack.c.h.b16 %v240
    %v928 = vunpack.c.l.b16 %v241
    %v929 = vunpack.c.h.b16 %v241
    %v930 = vunpack.c.l.b16 %v242
    %v931 = vunpack.c.h.b16 %v242
    %v932 = vunpack.c.l.b16 %v243
    %v933 = vunpack.c.h.b16 %v243
    %v934 = vunpack.c.l.b16 %v244
    %v935 = vunpack.c.h.b16 %v244
    %v936 = vunpack.c.l.b16 %v245
    %v937 = vunpack.c.h.b16 %v245
    %v938 = vunpack.c.l.b16 %v246
    %v939 = vunpack.c.h.b16 %v246
    %v940 = vunpack.c.l.b16 %v247
    %v941 = vunpack.c.h.b16 %v247
    %v942 = vunpack.c.l.b16 %v248
    %v943 = vunpack.c.h.b16 %v248
    %v944 = vunpack.c.l.b16 %v249
    %v945 = vunpack.c.h.b16 %v249
    %v946 = vunpack.c.l.b16 %v250
    %v947 = vunpack.c.h.b16 %v250
    %v948 = vunpack.c.l.b16 %v251
    %v949 = vunpack.c.h.b16 %v251
    %v950 = vunpack.c.l.b16 %v252
    %v951 = vunpack.c.h.b16 %v252
    %v952 = vunpack.c.l.b16 %v253
    %v953 = vunpack.c.h.b16 %v253
    %v954 = vunpack.c.l.b16 %v254
    %v955 = vunpack.c.h.b16 %v254
    %v956 = vunpack.c.l.b16 %v255
    %v957 = vunpack.c.h.b16 %v255
    %v958 = vunpack.c.l.b16 %v256
    %v959 = vunpack.c.h.b16 %v256
    %v960 = vunpack.c.l.b16 %v257
    %v961 = vunpack.c.h.b16 %v257
    %v962 = vunpack.c.l.b16 %v258
    %v963 = vunpack.c.h.b16 %v258
    %v964 = vunpack.c.l.b16 %v259
    %v965 = vunpack.c.h.b16 %v259
    %v966 = vunpack.c.l.b16 %v260
    %v967 = vunpack.c.h.b16 %v260
    %v968 = vunpack.c.l.b16 %v261
    %v969 = vunpack.c.h.b16 %v261
    %v970 = vunpack.c.l.b16 %v262
    %v971 = vunpack.c.h.b16 %v262
    %v972 = vunpack.c.l.b16 %v263
    %v973 = vunpack.c.h.b16 %v263
    %v974 = vunpack.c.l.b16 %v264
    %v975 = vunpack.c.h.b16 %v264
    %v976 = vunpack.c.l.b16 %v265
    %v977 = vunpack.c.h.b16 %v265
    %v978 = vunpack.c.l.b16 %v266
    %v979 = vunpack.c.h.b16 %v266
    %v980 = vunpack.c.l.b16 %v267
    %v981 = vunpack.c.h.b16 %v267
    %v982 = vunpack.c.l.b16 %v268
    %v983 = vunpack.c.h.b16 %v268
    %v984 = vunpack.c.l.b16 %v269
    %v985 = vunpack.c.h.b16 %v269
    %v986 = vunpack.c.l.b16 %v270
    %v987 = vunpack.c.h.b16 %v270
    %v988 = vunpack.c.l.b16 %v271
    %v989 = vunpack.c.h.b16 %v271
    %v990 = vunpack.c.l.b16 %v272
    %v991 = vunpack.c.h.b16 %v272
    %v992 = vunpack.c.l.b16 %v273
    %v993 = vunpack.c.h.b16 %v273
    %v994 = vunpack.c.l.b16 %v274
    %v995 = vunpack.c.h.b16 %v274
    %v996 = vunpack.c.l.b16 %v275
    %v997 = vunpack.c.h.b16 %v275
    %v998 = vunpack.c.l.b16 %v276
    %v999 = vunpack.c.h.b16 %v276
    %v1000 = vunpack.c.l.b16 %v277
    %v1001 = vunpack.c.h.b16 %v277
    %v1002 = vunpack.c.l.b16 %v278
    %v1003 = vunpack.c.h.b16 %v278
    %v1004 = vunpack.c.l.b16 %v279
    %v1005 = vunpack.c.h.b16 %v279
    %v1006 = vunpack.c.l.b16 %v280
    %v1007 = vunpack.c.h.b16 %v280
    %v1008 = vunpack.c.l.b16 %v281
    %v1009 = vunpack.c.h.b16 %v281
    %v1010 = vunpack.c.l.b16 %v282
    %v1011 = vunpack.c.h.b16 %v282
    %v1012 = vunpack.c.l.b16 %v283
    %v1013 = vunpack.c.h.b16 %v283
    %v1014 = vunpack.c.l.b16 %v284
    %v1015 = vunpack.c.h.b16 %v284
    %v1016 = vunpack.c.l.b16 %v285
    %v1017 = vunpack.c.h.b16 %v285
    %v1018 = vunpack.c.l.b16 %v286
    %v1019 = vunpack.c.h.b16 %v286
    %v1020 = vunpack.c.l.b16 %v287
    %v1021 = vunpack.c.h.b16 %v287
    %v1022 = vunpack.c.l.b16 %v288
    %v1023 = vunpack.c.h.b16 %v288
    %v1024 = vunpack.c.l.b16 %v289
    %v1025 = vunpack.c.h.b16 %v289
    %v1026 = vunpack.c.l.b16 %v290
    %v1027 = vunpack.c.h.b16 %v290
    %v1028 = vunpack.c.l.b16 %v291
    %v1029 = vunpack.c.h.b16 %v291
    %v1030 = vunpack.c.l.b16 %v292
    %v1031 = vunpack.c.h.b16 %v292
    %v1032 = vunpack.c.l.b16 %v293
    %v1033 = vunpack.c.h.b16 %v293
    %v1034 = vunpack.c.l.b16 %v294
    %v1035 = vunpack.c.h.b16 %v294
    %v1036 = vunpack.c.l.b16 %v295
    %v1037 = vunpack.c.h.b16 %v295
    %v1038 = vunpack.c.l.b16 %v296
    %v1039 = vunpack.c.h.b16 %v296
    %v1040 = vunpack.c.l.b16 %v297
    %v1041 = vunpack.c.h.b16 %v297
    %v1042 = vunpack.c.l.b16 %v298
    %v1043 = vunpack.c.h.b16 %v298
    %v1044 = vunpack.c.l.b16 %v299
    %v1045 = vunpack.c.h.b16 %v299
    %v1046 = vunpack.c.l.b16 %v300
    %v1047 = vunpack.c.h.b16 %v300
    %v1048 = vunpack.c.l.b16 %v301
    %v1049 = vunpack.c.h.b16 %v301
    %v1050 = vunpack.c.l.b16 %v302
    %v1051 = vunpack.c.h.b16 %v302
    %v1052 = vunpack.c.l.b16 %v303
    %v1053 = vunpack.c.h.b16 %v303
    %v1054 = vunpack.c.l.b16 %v304
    %v1055 = vunpack.c.h.b16 %v304
    %v1056 = vunpack.c.l.b16 %v305
    %v1057 = vunpack.c.h.b16 %v305
    %v1058 = vunpack.c.l.b16 %v306
    %v1059 = vunpack.c.h.b16 %v306
    %v1060 = vunpack.c.l.b16 %v307
    %v1061 = vunpack.c.h.b16 %v307
    %v1062 = vunpack.c.l.b16 %v308
    %v1063 = vunpack.c.h.b16 %v308
    %v1064 = vunpack.c.l.b16 %v309
    %v1065 = vunpack.c.h.b16 %v309
    %v1066 = vunpack.c.l.b16 %v310
    %v1067 = vunpack.c.h.b16 %v310
    %v1068 = vunpack.c.l.b16 %v311
    %v1069 = vunpack.c.h.b16 %v311
    %v1070 = vunpack.c.l.b16 %v312
    %v1071 = vunpack.c.h.b16 %v312
    %v1072 = vunpack.c.l.b16 %v313
    %v1073 = vunpack.c.h.b16 %v313
    %v1074 = vunpack.c.l.b16 %v314
    %v1075 = vunpack.c.h.b16 %v314
    %v1076 = vunpack.c.l.b16 %v315
    %v1077 = vunpack.c.h.b16 %v315
    %v1078 = vunpack.c.l.b16 %v316
    %v1079 = vunpack.c.h.b16 %v316
    %v1080 = vunpack.c.l.b16 %v317
    %v1081 = vunpack.c.h.b16 %v317
    %v1082 = vunpack.c.l.b16 %v318
    %v1083 = vunpack.c.h.b16 %v318
    %v1084 = vunpack.c.l.b16 %v319
    %v1085 = vunpack.c.h.b16 %v319
    %v1086 = vunpack.c.l.b16 %v320
    %v1087 = vunpack.c.h.b16 %v320
    %v1088 = vunpack.c.l.b16 %v321
    %v1089 = vunpack.c.h.b16 %v321
    %v1090 = vpack.c.b16 %v582, %v578
    %v1091 = vpack.c.b16 %v583, %v579
    %v1092 = vpack.c.b16 %v584, %v580
    %v1093 = vpack.c.b16 %v585, %v581
    %v1094 = vpack.c.b16 %v590, %v586
    %v1095 = vpack.c.b16 %v591, %v587
    %v1096 = vpack.c.b16 %v592, %v588
    %v1097 = vpack.c.b16 %v593, %v589
    %v1098 = vpack.c.b16 %v598, %v594
    %v1099 = vpack.c.b16 %v599, %v595
    %v1100 = vpack.c.b16 %v600, %v596
    %v1101 = vpack.c.b16 %v601, %v597
    %v1102 = vpack.c.b16 %v606, %v602
    %v1103 = vpack.c.b16 %v607, %v603
    %v1104 = vpack.c.b16 %v608, %v604
    %v1105 = vpack.c.b16 %v609, %v605
    %v1106 = vpack.c.b16 %v614, %v610
    %v1107 = vpack.c.b16 %v615, %v611
    %v1108 = vpack.c.b16 %v616, %v612
    %v1109 = vpack.c.b16 %v617, %v613
    %v1110 = vpack.c.b16 %v622, %v618
    %v1111 = vpack.c.b16 %v623, %v619
    %v1112 = vpack.c.b16 %v624, %v620
    %v1113 = vpack.c.b16 %v625, %v621
    %v1114 = vpack.c.b16 %v630, %v626
    %v1115 = vpack.c.b16 %v631, %v627
    %v1116 = vpack.c.b16 %v632, %v628
    %v1117 = vpack.c.b16 %v633, %v629
    %v1118 = vpack.c.b16 %v638, %v634
    %v1119 = vpack.c.b16 %v639, %v635
    %v1120 = vpack.c.b16 %v640, %v636
    %v1121 = vpack.c.b16 %v641, %v637
    %v1122 = vpack.c.b16 %v646, %v642
    %v1123 = vpack.c.b16 %v647, %v643
    %v1124 = vpack.c.b16 %v648, %v644
    %v1125 = vpack.c.b16 %v649, %v645
    %v1126 = vpack.c.b16 %v654, %v650
    %v1127 = vpack.c.b16 %v655, %v651
    %v1128 = vpack.c.b16 %v656, %v652
    %v1129 = vpack.c.b16 %v657, %v653
    %v1130 = vpack.c.b16 %v662, %v658
    %v1131 = vpack.c.b16 %v663, %v659
    %v1132 = vpack.c.b16 %v664, %v660
    %v1133 = vpack.c.b16 %v665, %v661
    %v1134 = vpack.c.b16 %v670, %v666
    %v1135 = vpack.c.b16 %v671, %v667
    %v1136 = vpack.c.b16 %v672, %v668
    %v1137 = vpack.c.b16 %v673, %v669
    %v1138 = vpack.c.b16 %v678, %v674
    %v1139 = vpack.c.b16 %v679, %v675
    %v1140 = vpack.c.b16 %v680, %v676
    %v1141 = vpack.c.b16 %v681, %v677
    %v1142 = vpack.c.b16 %v686, %v682
    %v1143 = vpack.c.b16 %v687, %v683
    %v1144 = vpack.c.b16 %v688, %v684
    %v1145 = vpack.c.b16 %v689, %v685
    %v1146 = vpack.c.b16 %v694, %v690
    %v1147 = vpack.c.b16 %v695, %v691
    %v1148 = vpack.c.b16 %v696, %v692
    %v1149 = vpack.c.b16 %v697, %v693
    %v1150 = vpack.c.b16 %v702, %v698
    %v1151 = vpack.c.b16 %v703, %v699
    %v1152 = vpack.c.b16 %v704, %v700
    %v1153 = vpack.c.b16 %v705, %v701
    %v1154 = vpack.c.b16 %v710, %v706
    %v1155 = vpack.c.b16 %v711, %v707
    %v1156 = vpack.c.b16 %v712, %v708
    %v1157 = vpack.c.b16 %v713, %v709
    %v1158 = vpack.c.b16 %v718, %v714
    %v1159 = vpack.c.b16 %v719, %v715
    %v1160 = vpack.c.b16 %v720, %v716
    %v1161 = vpack.c.b16 %v721, %v717
    %v1162 = vpack.c.b16 %v726, %v722
    %v1163 = vpack.c.b16 %v727, %v723
    %v1164 = vpack.c.b16 %v728, %v724
    %v1165 = vpack.c.b16 %v729, %v725
    %v1166 = vpack.c.b16 %v734, %v730
    %v1167 = vpack.c.b16 %v735, %v731
    %v1168 = vpack.c.b16 %v736, %v732
    %v1169 = vpack.c.b16 %v737, %v733
    %v1170 = vpack.c.b16 %v742, %v738
    %v1171 = vpack.c.b16 %v743, %v739
    %v1172 = vpack.c.b16 %v744, %v740
    %v1173 = vpack.c.b16 %v745, %v741
    %v1174 = vpack.c.b16 %v750, %v746
    %v1175 = vpack.c.b16 %v751, %v747
    %v1176 = vpack.c.b16 %v752, %v748
    %v1177 = vpack.c.b16 %v753, %v749
    %v1178 = vpack.c.b16 %v758, %v754
    %v1179 = vpack.c.b16 %v759, %v755
    %v1180 = vpack.c.b16 %v760, %v756
    %v1181 = vpack.c.b16 %v761, %v757
    %v1182 = vpack.c.b16 %v766, %v762
    %v1183 = vpack.c.b16 %v767, %v763
    %v1184 = vpack.c.b16 %v768, %v764
    %v1185 = vpack.c.b16 %v769, %v765
    %v1186 = vpack.c.b16 %v774, %v770
    %v1187 = vpack.c.b16 %v775, %v771
    %v1188 = vpack.c.b16 %v776, %v772
    %v1189 = vpack.c.b16 %v777, %v773
    %v1190 = vpack.c.b16 %v782, %v778
    %v1191 = vpack.c.b16 %v783, %v779
    %v1192 = vpack.c.b16 %v784, %v780
    %v1193 = vpack.c.b16 %v785, %v781
    %v1194 = vpack.c.b16 %v790, %v786
    %v1195 = vpack.c.b16 %v791, %v787
    %v1196 = vpack.c.b16 %v792, %v788
    %v1197 = vpack.c.b16 %v793, %v789
    %v1198 = vpack.c.b16 %v798, %v794
    %v1199 = vpack.c.b16 %v799, %v795
    %v1200 = vpack.c.b16 %v800, %v796
    %v1201 = vpack.c.b16 %v801, %v797
    %v1202 = vpack.c.b16 %v806, %v802
    %v1203 = vpack.c.b16 %v807, %v803
    %v1204 = vpack.c.b16 %v808, %v804
    %v1205 = vpack.c.b16 %v809, %v805
    %v1206 = vpack.c.b16 %v814, %v810
    %v1207 = vpack.c.b16 %v815, %v811
    %v1208 = vpack.c.b16 %v816, %v812
    %v1209 = vpack.c.b16 %v817, %v813
    %v1210 = vpack.c.b16 %v822, %v818
    %v1211 = vpack.c.b16 %v823, %v819
    %v1212 = vpack.c.b16 %v824, %v820
    %v1213 = vpack.c.b16 %v825, %v821
    %v1214 = vpack.c.b16 %v830, %v826
    %v1215 = vpack.c.b16 %v831, %v827
    %v1216 = vpack.c.b16 %v832, %v828
    %v1217 = vpack.c.b16 %v833, %v829
    %v1218 = vpack.c.b16 %v838, %v834
    %v1219 = vpack.c.b16 %v839, %v835
    %v1220 = vpack.c.b16 %v840, %v836
    %v1221 = vpack.c.b16 %v841, %v837
    %v1222 = vpack.c.b16 %v846, %v842
    %v1223 = vpack.c.b16 %v847, %v843
    %v1224 = vpack.c.b16 %v848, %v844
    %v1225 = vpack.c.b16 %v849, %v845
    %v1226 = vpack.c.b16 %v854, %v850
    %v1227 = vpack.c.b16 %v855, %v851
    %v1228 = vpack.c.b16 %v856, %v852
    %v1229 = vpack.c.b16 %v857, %v853
    %v1230 = vpack.c.b16 %v862, %v858
    %v1231 = vpack.c.b16 %v863, %v859
    %v1232 = vpack.c.b16 %v864, %v860
    %v1233 = vpack.c.b16 %v865, %v861
    %v1234 = vpack.c.b16 %v870, %v866
    %v1235 = vpack.c.b16 %v871, %v867
    %v1236 = vpack.c.b16 %v872, %v868
    %v1237 = vpack.c.b16 %v873, %v869
    %v1238 = vpack.c.b16 %v878, %v874
    %v1239 = vpack.c.b16 %v879, %v875
    %v1240 = vpack.c.b16 %v880, %v876
    %v1241 = vpack.c.b16 %v881, %v877
    %v1242 = vpack.c.b16 %v886, %v882
    %v1243 = vpack.c.b16 %v887, %v883
    %v1244 = vpack.c.b16 %v888, %v884
    %v1245 = vpack.c.b16 %v889, %v885
    %v1246 = vpack.c.b16 %v894, %v890
    %v1247 = vpack.c.b16 %v895, %v891
    %v1248 = vpack.c.b16 %v896, %v892
    %v1249 = vpack.c.b16 %v897, %v893
    %v1250 = vpack.c.b16 %v902, %v898
    %v1251 = vpack.c.b16 %v903, %v899
    %v1252 = vpack.c.b16 %v904, %v900
    %v1253 = vpack.c.b16 %v905, %v901
    %v1254 = vpack.c.b16 %v910, %v906
    %v1255 = vpack.c.b16 %v911, %v907
    %v1256 = vpack.c.b16 %v912, %v908
    %v1257 = vpack.c.b16 %v913, %v909
    %v1258 = vpack.c.b16 %v918, %v914
    %v1259 = vpack.c.b16 %v919, %v915
    %v1260 = vpack.c.b16 %v920, %v916
    %v1261 = vpack.c.b16 %v921, %v917
    %v1262 = vpack.c.b16 %v926, %v922
    %v1263 = vpack.c.b16 %v927, %v923
    %v1264 = vpack.c.b16 %v928, %v924
    %v1265 = vpack.c.b16 %v929, %v925
    %v1266 = vpack.c.b16 %v934, %v930
    %v1267 = vpack.c.b16 %v935, %v931
    %v1268 = vpack.c.b16 %v936, %v932
    %v1269 = vpack.c.b16 %v937, %v933
    %v1270 = vpack.c.b16 %v942, %v938
    %v1271 = vpack.c.b16 %v943, %v939
    %v1272 = vpack.c.b16 %v944, %v940
    %v1273 = vpack.c.b16 %v945, %v941
    %v1274 = vpack.c.b16 %v950, %v946
    %v1275 = vpack.c.b16 %v951, %v947
    %v1276 = vpack.c.b16 %v952, %v948
    %v1277 = vpack.c.b16 %v953, %v949
    %v1278 = vpack.c.b16 %v958, %v954
    %v1279 = vpack.c.b16 %v959, %v955
    %v1280 = vpack.c.b16 %v960, %v956
    %v1281 = vpack.c.b16 %v961, %v957
    %v1282 = vpack.c.b16 %v966, %v962
    %v1283 = vpack.c.b16 %v967, %v963
    %v1284 = vpack.c.b16 %v968, %v964
    %v1285 = vpack.c.b16 %v969, %v965
    %v1286 = vpack.c.b16 %v974, %v970
    %v1287 = vpack.c.b16 %v975, %v971
    %v1288 = vpack.c.b16 %v976, %v972
    %v1289 = vpack.c.b16 %v977, %v973
    %v1290 = vpack.c.b16 %v982, %v978
    %v1291 = vpack.c.b16 %v983, %v979
    %v1292 = vpack.c.b16 %v984, %v980
    %v1293 = vpack.c.b16 %v985, %v981
    %v1294 = vpack.c.b16 %v990, %v986
    %v1295 = vpack.c.b16 %v991, %v987
    %v1296 = vpack.c.b16 %v992, %v988
    %v1297 = vpack.c.b16 %v993, %v989
    %v1298 = vpack.c.b16 %v998, %v994
    %v1299 = vpack.c.b16 %v999, %v995
    %v1300 = vpack.c.b16 %v1000, %v996
    %v1301 = vpack.c.b16 %v1001, %v997
    %v1302 = vpack.c.b16 %v1006, %v1002
    %v1303 = vpack.c.b16 %v1007, %v1003
    %v1304 = vpack.c.b16 %v1008, %v1004
    %v1305 = vpack.c.b16 %v1009, %v1005
    %v1306 = vpack.c.b16 %v1014, %v1010
    %v1307 = vpack.c.b16 %v1015, %v1011
    %v1308 = vpack.c.b16 %v1016, %v1012
    %v1309 = vpack.c.b16 %v1017, %v1013
    %v1310 = vpack.c.b16 %v1022, %v1018
    %v1311 = vpack.c.b16 %v1023, %v1019
    %v1312 = vpack.c.b16 %v1024, %v1020
    %v1313 = vpack.c.b16 %v1025, %v1021
    %v1314 = vpack.c.b16 %v1030, %v1026
    %v1315 = vpack.c.b16 %v1031, %v1027
    %v1316 = vpack.c.b16 %v1032, %v1028
    %v1317 = vpack.c.b16 %v1033, %v1029
    %v1318 = vpack.c.b16 %v1038, %v1034
    %v1319 = vpack.c.b16 %v1039, %v1035
    %v1320 = vpack.c.b16 %v1040, %v1036
    %v1321 = vpack.c.b16 %v1041, %v1037
    %v1322 = vpack.c.b16 %v1046, %v1042
    %v1323 = vpack.c.b16 %v1047, %v1043
    %v1324 = vpack.c.b16 %v1048, %v1044
    %v1325 = vpack.c.b16 %v1049, %v1045
    %v1326 = vpack.c.b16 %v1054, %v1050
    %v1327 = vpack.c.b16 %v1055, %v1051
    %v1328 = vpack.c.b16 %v1056, %v1052
    %v1329 = vpack.c.b16 %v1057, %v1053
    %v1330 = vpack.c.b16 %v1062, %v1058
    %v1331 = vpack.c.b16 %v1063, %v1059
    %v1332 = vpack.c.b16 %v1064, %v1060
    %v1333 = vpack.c.b16 %v1065, %v1061
    %v1334 = vpack.c.b16 %v1070, %v1066
    %v1335 = vpack.c.b16 %v1071, %v1067
    %v1336 = vpack.c.b16 %v1072, %v1068
    %v1337 = vpack.c.b16 %v1073, %v1069
    %v1338 = vpack.c.b16 %v1078, %v1074
    %v1339 = vpack.c.b16 %v1079, %v1075
    %v1340 = vpack.c.b16 %v1080, %v1076
    %v1341 = vpack.c.b16 %v1081, %v1077
    %v1342 = vpack.c.b16 %v1086, %v1082
    %v1343 = vpack.c.b16 %v1087, %v1083
    %v1344 = vpack.c.b16 %v1088, %v1084
    %v1345 = vpack.c.b16 %v1089, %v1085
    %1602 = vmatprep.subr.bf16.mxu0 %v1091
    %1603 = vmatpush1.bf16.msra.mxu0 %v1090
    %1604 = vmatprep.subr.bf16.mxu0 %v1095
    %1605 = vmatpush1.bf16.msra.mxu0 %v1094
    %1606 = vmatprep.subr.bf16.mxu0 %v1099
    %1607 = vmatpush1.bf16.msra.mxu0 %v1098
    %1608 = vmatprep.subr.bf16.mxu0 %v1103
    %1609 = vmatpush1.bf16.msra.mxu0 %v1102
    %1610 = vmatprep.subr.bf16.mxu0 %v1107
    %1611 = vmatpush1.bf16.msra.mxu0 %v1106
    %1612 = vmatprep.subr.bf16.mxu0 %v1111
    %1613 = vmatpush1.bf16.msra.mxu0 %v1110
    %1614 = vmatprep.subr.bf16.mxu0 %v1115
    %1615 = vmatpush1.bf16.msra.mxu0 %v1114
    %1616 = vmatprep.subr.bf16.mxu0 %v1119
    %1617 = vmatpush1.bf16.msra.mxu0 %v1118
    %1618 = vmatprep.subr.bf16.mxu0 %v1123
    %1619 = vmatpush1.bf16.msra.mxu0 %v1122
    %1620 = vmatprep.subr.bf16.mxu0 %v1127
    %1621 = vmatpush1.bf16.msra.mxu0 %v1126
    %1622 = vmatprep.subr.bf16.mxu0 %v1131
    %1623 = vmatpush1.bf16.msra.mxu0 %v1130
    %1624 = vmatprep.subr.bf16.mxu0 %v1135
    %1625 = vmatpush1.bf16.msra.mxu0 %v1134
    %1626 = vmatprep.subr.bf16.mxu0 %v1139
    %1627 = vmatpush1.bf16.msra.mxu0 %v1138
    %1628 = vmatprep.subr.bf16.mxu0 %v1143
    %1629 = vmatpush1.bf16.msra.mxu0 %v1142
    %1630 = vmatprep.subr.bf16.mxu0 %v1147
    %1631 = vmatpush1.bf16.msra.mxu0 %v1146
    %1632 = vmatprep.subr.bf16.mxu0 %v1151
    %1633 = vmatpush1.bf16.msra.mxu0 %v1150
    %1634 = vmatprep.mubr.bf16.mxu0 %v59
    %1635 = vmatmul.mubr.bf16.gmra.mrb[0].mxu0 %v58
    %v1636 = vpop.f32.mrb[0].mxu0
    %v1637 = vadd.f32 0.0, %v1636
    %v1638 = vpop.f32.mrb[0].mxu0
    %v1639 = vadd.f32 0.0, %v1638
    %v1640 = vpop.f32.mrb[0].mxu0
    %v1641 = vpop.f32.mrb[0].mxu0
    %1642 = vdwg.mxu0
    %1643 = vmatprep.subr.bf16.mxu0 %v1155
    %1644 = vmatpush1.bf16.msra.mxu0 %v1154
    %1645 = vmatprep.subr.bf16.mxu0 %v1159
    %1646 = vmatpush1.bf16.msra.mxu0 %v1158
    %1647 = vmatprep.subr.bf16.mxu0 %v1163
    %1648 = vmatpush1.bf16.msra.mxu0 %v1162
    %1649 = vmatprep.subr.bf16.mxu0 %v1167
    %1650 = vmatpush1.bf16.msra.mxu0 %v1166
    %1651 = vmatprep.subr.bf16.mxu0 %v1171
    %1652 = vmatpush1.bf16.msra.mxu0 %v1170
    %1653 = vmatprep.subr.bf16.mxu0 %v1175
    %1654 = vmatpush1.bf16.msra.mxu0 %v1174
    %1655 = vmatprep.subr.bf16.mxu0 %v1179
    %1656 = vmatpush1.bf16.msra.mxu0 %v1178
    %1657 = vmatprep.subr.bf16.mxu0 %v1183
    %1658 = vmatpush1.bf16.msra.mxu0 %v1182
    %1659 = vmatprep.subr.bf16.mxu0 %v1187
    %1660 = vmatpush1.bf16.msra.mxu0 %v1186
    %1661 = vmatprep.subr.bf16.mxu0 %v1191
    %1662 = vmatpush1.bf16.msra.mxu0 %v1190
    %1663 = vmatprep.subr.bf16.mxu0 %v1195
    %1664 = vmatpush1.bf16.msra.mxu0 %v1194
    %1665 = vmatprep.subr.bf16.mxu0 %v1199
    %1666 = vmatpush1.bf16.msra.mxu0 %v1198
    %1667 = vmatprep.subr.bf16.mxu0 %v1203
    %1668 = vmatpush1.bf16.msra.mxu0 %v1202
    %1669 = vmatprep.subr.bf16.mxu0 %v1207
    %1670 = vmatpush1.bf16.msra.mxu0 %v1206
    %1671 = vmatprep.subr.bf16.mxu0 %v1211
    %1672 = vmatpush1.bf16.msra.mxu0 %v1210
    %1673 = vmatprep.subr.bf16.mxu0 %v1215
    %1674 = vmatpush1.bf16.msra.mxu0 %v1214
    %1675 = vmatprep.mubr.bf16.mxu0 %v61
    %1676 = vmatmul.mubr.bf16.gmra.mrb[0].mxu0 %v60
    %v1677 = vpop.f32.mrb[0].mxu0
    %v1678 = vadd.f32 %v1637, %v1677
    %v1679 = vpop.f32.mrb[0].mxu0
    %v1680 = vadd.f32 %v1639, %v1679
    %v1681 = vpop.f32.mrb[0].mxu0
    %v1682 = vpop.f32.mrb[0].mxu0
    %1683 = vdwg.mxu0
    %1684 = vmatprep.subr.bf16.mxu0 %v1219
    %1685 = vmatpush1.bf16.msra.mxu0 %v1218
    %1686 = vmatprep.subr.bf16.mxu0 %v1223
    %1687 = vmatpush1.bf16.msra.mxu0 %v1222
    %1688 = vmatprep.subr.bf16.mxu0 %v1227
    %1689 = vmatpush1.bf16.msra.mxu0 %v1226
    %1690 = vmatprep.subr.bf16.mxu0 %v1231
    %1691 = vmatpush1.bf16.msra.mxu0 %v1230
    %1692 = vmatprep.subr.bf16.mxu0 %v1235
    %1693 = vmatpush1.bf16.msra.mxu0 %v1234
    %1694 = vmatprep.subr.bf16.mxu0 %v1239
    %1695 = vmatpush1.bf16.msra.mxu0 %v1238
    %1696 = vmatprep.subr.bf16.mxu0 %v1243
    %1697 = vmatpush1.bf16.msra.mxu0 %v1242
    %1698 = vmatprep.subr.bf16.mxu0 %v1247
    %1699 = vmatpush1.bf16.msra.mxu0 %v1246
    %1700 = vmatprep.subr.bf16.mxu0 %v1251
    %1701 = vmatpush1.bf16.msra.mxu0 %v1250
    %1702 = vmatprep.subr.bf16.mxu0 %v1255
    %1703 = vmatpush1.bf16.msra.mxu0 %v1254
    %1704 = vmatprep.subr.bf16.mxu0 %v1259
    %1705 = vmatpush1.bf16.msra.mxu0 %v1258
    %1706 = vmatprep.subr.bf16.mxu0 %v1263
    %1707 = vmatpush1.bf16.msra.mxu0 %v1262
    %1708 = vmatprep.subr.bf16.mxu0 %v1267
    %1709 = vmatpush1.bf16.msra.mxu0 %v1266
    %1710 = vmatprep.subr.bf16.mxu0 %v1271
    %1711 = vmatpush1.bf16.msra.mxu0 %v1270
    %1712 = vmatprep.subr.bf16.mxu0 %v1275
    %1713 = vmatpush1.bf16.msra.mxu0 %v1274
    %1714 = vmatprep.subr.bf16.mxu0 %v1279
    %1715 = vmatpush1.bf16.msra.mxu0 %v1278
    %1716 = vmatprep.mubr.bf16.mxu0 %v63
    %1717 = vmatmul.mubr.bf16.gmra.mrb[0].mxu0 %v62
    %v1718 = vpop.f32.mrb[0].mxu0
    %v1719 = vadd.f32 %v1678, %v1718
    %v1720 = vpop.f32.mrb[0].mxu0
    %v1721 = vadd.f32 %v1680, %v1720
    %v1722 = vpop.f32.mrb[0].mxu0
    %v1723 = vpop.f32.mrb[0].mxu0
    %1724 = vdwg.mxu0
    %1725 = vmatprep.subr.bf16.mxu0 %v1283
    %1726 = vmatpush1.bf16.msra.mxu0 %v1282
    %1727 = vmatprep.subr.bf16.mxu0 %v1287
    %1728 = vmatpush1.bf16.msra.mxu0 %v1286
    %1729 = vmatprep.subr.bf16.mxu0 %v1291
    %1730 = vmatpush1.bf16.msra.mxu0 %v1290
    %1731 = vmatprep.subr.bf16.mxu0 %v1295
    %1732 = vmatpush1.bf16.msra.mxu0 %v1294
    %1733 = vmatprep.subr.bf16.mxu0 %v1299
    %1734 = vmatpush1.bf16.msra.mxu0 %v1298
    %1735 = vmatprep.subr.bf16.mxu0 %v1303
    %1736 = vmatpush1.bf16.msra.mxu0 %v1302
    %1737 = vmatprep.subr.bf16.mxu0 %v1307
    %1738 = vmatpush1.bf16.msra.mxu0 %v1306
    %1739 = vmatprep.subr.bf16.mxu0 %v1311
    %1740 = vmatpush1.bf16.msra.mxu0 %v1310
    %1741 = vmatprep.subr.bf16.mxu0 %v1315
    %1742 = vmatpush1.bf16.msra.mxu0 %v1314
    %1743 = vmatprep.subr.bf16.mxu0 %v1319
    %1744 = vmatpush1.bf16.msra.mxu0 %v1318
    %1745 = vmatprep.subr.bf16.mxu0 %v1323
    %1746 = vmatpush1.bf16.msra.mxu0 %v1322
    %1747 = vmatprep.subr.bf16.mxu0 %v1327
    %1748 = vmatpush1.bf16.msra.mxu0 %v1326
    %1749 = vmatprep.subr.bf16.mxu0 %v1331
    %1750 = vmatpush1.bf16.msra.mxu0 %v1330
    %1751 = vmatprep.subr.bf16.mxu0 %v1335
    %1752 = vmatpush1.bf16.msra.mxu0 %v1334
    %1753 = vmatprep.subr.bf16.mxu0 %v1339
    %1754 = vmatpush1.bf16.msra.mxu0 %v1338
    %1755 = vmatprep.subr.bf16.mxu0 %v1343
    %1756 = vmatpush1.bf16.msra.mxu0 %v1342
    %1757 = vmatprep.mubr.bf16.mxu0 %v65
    %1758 = vmatmul.mubr.bf16.gmra.mrb[0].mxu0 %v64
    %v1759 = vpop.f32.mrb[0].mxu0
    %v1760 = vadd.f32 %v1719, %v1759
    %v1761 = vpop.f32.mrb[0].mxu0
    %v1762 = vadd.f32 %v1721, %v1761
    %v1763 = vpop.f32.mrb[0].mxu0
    %v1764 = vpop.f32.mrb[0].mxu0
    %1765 = vdwg.mxu0
    %1766 = vmatprep.subr.bf16.mxu0 %v1093
    %1767 = vmatpush1.bf16.msra.mxu0 %v1092
    %1768 = vmatprep.subr.bf16.mxu0 %v1097
    %1769 = vmatpush1.bf16.msra.mxu0 %v1096
    %1770 = vmatprep.subr.bf16.mxu0 %v1101
    %1771 = vmatpush1.bf16.msra.mxu0 %v1100
    %1772 = vmatprep.subr.bf16.mxu0 %v1105
    %1773 = vmatpush1.bf16.msra.mxu0 %v1104
    %1774 = vmatprep.subr.bf16.mxu0 %v1109
    %1775 = vmatpush1.bf16.msra.mxu0 %v1108
    %1776 = vmatprep.subr.bf16.mxu0 %v1113
    %1777 = vmatpush1.bf16.msra.mxu0 %v1112
    %1778 = vmatprep.subr.bf16.mxu0 %v1117
    %1779 = vmatpush1.bf16.msra.mxu0 %v1116
    %1780 = vmatprep.subr.bf16.mxu0 %v1121
    %1781 = vmatpush1.bf16.msra.mxu0 %v1120
    %1782 = vmatprep.subr.bf16.mxu0 %v1125
    %1783 = vmatpush1.bf16.msra.mxu0 %v1124
    %1784 = vmatprep.subr.bf16.mxu0 %v1129
    %1785 = vmatpush1.bf16.msra.mxu0 %v1128
    %1786 = vmatprep.subr.bf16.mxu0 %v1133
    %1787 = vmatpush1.bf16.msra.mxu0 %v1132
    %1788 = vmatprep.subr.bf16.mxu0 %v1137
    %1789 = vmatpush1.bf16.msra.mxu0 %v1136
    %1790 = vmatprep.subr.bf16.mxu0 %v1141
    %1791 = vmatpush1.bf16.msra.mxu0 %v1140
    %1792 = vmatprep.subr.bf16.mxu0 %v1145
    %1793 = vmatpush1.bf16.msra.mxu0 %v1144
    %1794 = vmatprep.subr.bf16.mxu0 %v1149
    %1795 = vmatpush1.bf16.msra.mxu0 %v1148
    %1796 = vmatprep.subr.bf16.mxu0 %v1153
    %1797 = vmatpush1.bf16.msra.mxu0 %v1152
    %1798 = vmatprep.mubr.bf16.mxu0 %v59
    %1799 = vmatmul.mubr.bf16.gmra.mrb[0].mxu0 %v58
    %v1800 = vpop.f32.mrb[0].mxu0
    %v1801 = vadd.f32 0.0, %v1800
    %v1802 = vpop.f32.mrb[0].mxu0
    %v1803 = vadd.f32 0.0, %v1802
    %v1804 = vpop.f32.mrb[0].mxu0
    %v1805 = vpop.f32.mrb[0].mxu0
    %1806 = vdwg.mxu0
    %1807 = vmatprep.subr.bf16.mxu0 %v1157
    %1808 = vmatpush1.bf16.msra.mxu0 %v1156
    %1809 = vmatprep.subr.bf16.mxu0 %v1161
    %1810 = vmatpush1.bf16.msra.mxu0 %v1160
    %1811 = vmatprep.subr.bf16.mxu0 %v1165
    %1812 = vmatpush1.bf16.msra.mxu0 %v1164
    %1813 = vmatprep.subr.bf16.mxu0 %v1169
    %1814 = vmatpush1.bf16.msra.mxu0 %v1168
    %1815 = vmatprep.subr.bf16.mxu0 %v1173
    %1816 = vmatpush1.bf16.msra.mxu0 %v1172
    %1817 = vmatprep.subr.bf16.mxu0 %v1177
    %1818 = vmatpush1.bf16.msra.mxu0 %v1176
    %1819 = vmatprep.subr.bf16.mxu0 %v1181
    %1820 = vmatpush1.bf16.msra.mxu0 %v1180
    %1821 = vmatprep.subr.bf16.mxu0 %v1185
    %1822 = vmatpush1.bf16.msra.mxu0 %v1184
    %1823 = vmatprep.subr.bf16.mxu0 %v1189
    %1824 = vmatpush1.bf16.msra.mxu0 %v1188
    %1825 = vmatprep.subr.bf16.mxu0 %v1193
    %1826 = vmatpush1.bf16.msra.mxu0 %v1192
    %1827 = vmatprep.subr.bf16.mxu0 %v1197
    %1828 = vmatpush1.bf16.msra.mxu0 %v1196
    %1829 = vmatprep.subr.bf16.mxu0 %v1201
    %1830 = vmatpush1.bf16.msra.mxu0 %v1200
    %1831 = vmatprep.subr.bf16.mxu0 %v1205
    %1832 = vmatpush1.bf16.msra.mxu0 %v1204
    %1833 = vmatprep.subr.bf16.mxu0 %v1209
    %1834 = vmatpush1.bf16.msra.mxu0 %v1208
    %1835 = vmatprep.subr.bf16.mxu0 %v1213
    %1836 = vmatpush1.bf16.msra.mxu0 %v1212
    %1837 = vmatprep.subr.bf16.mxu0 %v1217
    %1838 = vmatpush1.bf16.msra.mxu0 %v1216
    %1839 = vmatprep.mubr.bf16.mxu0 %v61
    %1840 = vmatmul.mubr.bf16.gmra.mrb[0].mxu0 %v60
    %v1841 = vpop.f32.mrb[0].mxu0
    %v1842 = vadd.f32 %v1801, %v1841
    %v1843 = vpop.f32.mrb[0].mxu0
    %v1844 = vadd.f32 %v1803, %v1843
    %v1845 = vpop.f32.mrb[0].mxu0
    %v1846 = vpop.f32.mrb[0].mxu0
    %1847 = vdwg.mxu0
    %1848 = vmatprep.subr.bf16.mxu0 %v1221
    %1849 = vmatpush1.bf16.msra.mxu0 %v1220
    %1850 = vmatprep.subr.bf16.mxu0 %v1225
    %1851 = vmatpush1.bf16.msra.mxu0 %v1224
    %1852 = vmatprep.subr.bf16.mxu0 %v1229
    %1853 = vmatpush1.bf16.msra.mxu0 %v1228
    %1854 = vmatprep.subr.bf16.mxu0 %v1233
    %1855 = vmatpush1.bf16.msra.mxu0 %v1232
    %1856 = vmatprep.subr.bf16.mxu0 %v1237
    %1857 = vmatpush1.bf16.msra.mxu0 %v1236
    %1858 = vmatprep.subr.bf16.mxu0 %v1241
    %1859 = vmatpush1.bf16.msra.mxu0 %v1240
    %1860 = vmatprep.subr.bf16.mxu0 %v1245
    %1861 = vmatpush1.bf16.msra.mxu0 %v1244
    %1862 = vmatprep.subr.bf16.mxu0 %v1249
    %1863 = vmatpush1.bf16.msra.mxu0 %v1248
    %1864 = vmatprep.subr.bf16.mxu0 %v1253
    %1865 = vmatpush1.bf16.msra.mxu0 %v1252
    %1866 = vmatprep.subr.bf16.mxu0 %v1257
    %1867 = vmatpush1.bf16.msra.mxu0 %v1256
    %1868 = vmatprep.subr.bf16.mxu0 %v1261
    %1869 = vmatpush1.bf16.msra.mxu0 %v1260
    %1870 = vmatprep.subr.bf16.mxu0 %v1265
    %1871 = vmatpush1.bf16.msra.mxu0 %v1264
    %1872 = vmatprep.subr.bf16.mxu0 %v1269
    %1873 = vmatpush1.bf16.msra.mxu0 %v1268
    %1874 = vmatprep.subr.bf16.mxu0 %v1273
    %1875 = vmatpush1.bf16.msra.mxu0 %v1272
    %1876 = vmatprep.subr.bf16.mxu0 %v1277
    %1877 = vmatpush1.bf16.msra.mxu0 %v1276
    %1878 = vmatprep.subr.bf16.mxu0 %v1281
    %1879 = vmatpush1.bf16.msra.mxu0 %v1280
    %1880 = vmatprep.mubr.bf16.mxu0 %v63
    %1881 = vmatmul.mubr.bf16.gmra.mrb[0].mxu0 %v62
    %v1882 = vpop.f32.mrb[0].mxu0
    %v1883 = vadd.f32 %v1842, %v1882
    %v1884 = vpop.f32.mrb[0].mxu0
    %v1885 = vadd.f32 %v1844, %v1884
    %v1886 = vpop.f32.mrb[0].mxu0
    %v1887 = vpop.f32.mrb[0].mxu0
    %1888 = vdwg.mxu0
    %1889 = vmatprep.subr.bf16.mxu0 %v1285
    %1890 = vmatpush1.bf16.msra.mxu0 %v1284
    %1891 = vmatprep.subr.bf16.mxu0 %v1289
    %1892 = vmatpush1.bf16.msra.mxu0 %v1288
    %1893 = vmatprep.subr.bf16.mxu0 %v1293
    %1894 = vmatpush1.bf16.msra.mxu0 %v1292
    %1895 = vmatprep.subr.bf16.mxu0 %v1297
    %1896 = vmatpush1.bf16.msra.mxu0 %v1296
    %1897 = vmatprep.subr.bf16.mxu0 %v1301
    %1898 = vmatpush1.bf16.msra.mxu0 %v1300
    %1899 = vmatprep.subr.bf16.mxu0 %v1305
    %1900 = vmatpush1.bf16.msra.mxu0 %v1304
    %1901 = vmatprep.subr.bf16.mxu0 %v1309
    %1902 = vmatpush1.bf16.msra.mxu0 %v1308
    %1903 = vmatprep.subr.bf16.mxu0 %v1313
    %1904 = vmatpush1.bf16.msra.mxu0 %v1312
    %1905 = vmatprep.subr.bf16.mxu0 %v1317
    %1906 = vmatpush1.bf16.msra.mxu0 %v1316
    %1907 = vmatprep.subr.bf16.mxu0 %v1321
    %1908 = vmatpush1.bf16.msra.mxu0 %v1320
    %1909 = vmatprep.subr.bf16.mxu0 %v1325
    %1910 = vmatpush1.bf16.msra.mxu0 %v1324
    %1911 = vmatprep.subr.bf16.mxu0 %v1329
    %1912 = vmatpush1.bf16.msra.mxu0 %v1328
    %1913 = vmatprep.subr.bf16.mxu0 %v1333
    %1914 = vmatpush1.bf16.msra.mxu0 %v1332
    %1915 = vmatprep.subr.bf16.mxu0 %v1337
    %1916 = vmatpush1.bf16.msra.mxu0 %v1336
    %1917 = vmatprep.subr.bf16.mxu0 %v1341
    %1918 = vmatpush1.bf16.msra.mxu0 %v1340
    %1919 = vmatprep.subr.bf16.mxu0 %v1345
    %1920 = vmatpush1.bf16.msra.mxu0 %v1344
    %1921 = vmatprep.mubr.bf16.mxu0 %v65
    %1922 = vmatmul.mubr.bf16.gmra.mrb[0].mxu0 %v64
    %v1923 = vpop.f32.mrb[0].mxu0
    %v1924 = vadd.f32 %v1883, %v1923
    %v1925 = vpop.f32.mrb[0].mxu0
    %v1926 = vadd.f32 %v1885, %v1925
    %v1927 = vpop.f32.mrb[0].mxu0
    %v1928 = vpop.f32.mrb[0].mxu0
    %1929 = vdwg.mxu0
    %v1930 = vxor.u32 %v1760, 2147483648
    %v1931 = vxor.u32 %v1762, 2147483648
    %v1932 = vxor.u32 %v1924, 2147483648
    %v1933 = vxor.u32 %v1926, 2147483648
    %v1934 = vmul.f32 %v1930, 1.442695
    %v1935 = vpow.pop %v1934
    %v1936 = vmul.f32 %v1931, 1.442695
    %v1937 = vpow.pop %v1936
    %v1938 = vmul.f32 %v1932, 1.442695
    %v1939 = vpow.pop %v1938
    %v1940 = vmul.f32 %v1933, 1.442695
    %v1941 = vpow.pop %v1940
    %v1942 = vadd.f32 %v1935, 1.0
    %v1943 = vadd.f32 %v1937, 1.0
    %v1944 = vadd.f32 %v1939, 1.0
    %v1945 = vadd.f32 %v1941, 1.0
    %v1946 = vrcp.pop %v1942
    %v1947 = vmul.f32 1.0, %v1946
    %v1948 = vrcp.pop %v1943
    %v1949 = vmul.f32 1.0, %v1948
    %v1950 = vrcp.pop %v1944
    %v1951 = vmul.f32 1.0, %v1950
    %v1952 = vrcp.pop %v1945
    %v1953 = vmul.f32 1.0, %v1952
    %v1954 = vpack.c.bf16 %v1947, %v1947
    %v1955 = vpack.c.bf16 %v1949, %v1949
    %v1956 = vpack.c.bf16 %v1951, %v1951
    %v1957 = vpack.c.bf16 %v1953, %v1953
    %v1958 = vld [vmem:[#allocation4] sm:$0xff]
    %v1959 = vld [vmem:[#allocation4 + $0x8] sm:$0xff]
    %v1960 = vld [vmem:[#allocation4 + $0x10] sm:$0xff]
    %v1961 = vld [vmem:[#allocation4 + $0x18] sm:$0xff]
    %v1962 = vld [vmem:[#allocation4 + $0x20] sm:$0xff]
    %v1963 = vld [vmem:[#allocation4 + $0x28] sm:$0xff]
    %v1964 = vld [vmem:[#allocation4 + $0x30] sm:$0xff]
    %v1965 = vld [vmem:[#allocation4 + $0x38] sm:$0xff]
    %v1966 = vld [vmem:[#allocation4 + $0x40] sm:$0xff]
    %v1967 = vld [vmem:[#allocation4 + $0x48] sm:$0xff]
    %v1968 = vld [vmem:[#allocation4 + $0x50] sm:$0xff]
    %v1969 = vld [vmem:[#allocation4 + $0x58] sm:$0xff]
    %v1970 = vld [vmem:[#allocation4 + $0x60] sm:$0xff]
    %v1971 = vld [vmem:[#allocation4 + $0x68] sm:$0xff]
    %v1972 = vld [vmem:[#allocation4 + $0x70] sm:$0xff]
    %v1973 = vld [vmem:[#allocation4 + $0x78] sm:$0xff]
    %v1974 = vld [vmem:[#allocation4 + $0x80] sm:$0xff]
    %v1975 = vld [vmem:[#allocation4 + $0x88] sm:$0xff]
    %v1976 = vld [vmem:[#allocation4 + $0x90] sm:$0xff]
    %v1977 = vld [vmem:[#allocation4 + $0x98] sm:$0xff]
    %v1978 = vld [vmem:[#allocation4 + $0xa0] sm:$0xff]
    %v1979 = vld [vmem:[#allocation4 + $0xa8] sm:$0xff]
    %v1980 = vld [vmem:[#allocation4 + $0xb0] sm:$0xff]
    %v1981 = vld [vmem:[#allocation4 + $0xb8] sm:$0xff]
    %v1982 = vld [vmem:[#allocation4 + $0xc0] sm:$0xff]
    %v1983 = vld [vmem:[#allocation4 + $0xc8] sm:$0xff]
    %v1984 = vld [vmem:[#allocation4 + $0xd0] sm:$0xff]
    %v1985 = vld [vmem:[#allocation4 + $0xd8] sm:$0xff]
    %v1986 = vld [vmem:[#allocation4 + $0xe0] sm:$0xff]
    %v1987 = vld [vmem:[#allocation4 + $0xe8] sm:$0xff]
    %v1988 = vld [vmem:[#allocation4 + $0xf0] sm:$0xff]
    %v1989 = vld [vmem:[#allocation4 + $0xf8] sm:$0xff]
    %v1990 = vld [vmem:[#allocation4 + $0x100] sm:$0xff]
    %v1991 = vld [vmem:[#allocation4 + $0x108] sm:$0xff]
    %v1992 = vld [vmem:[#allocation4 + $0x110] sm:$0xff]
    %v1993 = vld [vmem:[#allocation4 + $0x118] sm:$0xff]
    %v1994 = vld [vmem:[#allocation4 + $0x120] sm:$0xff]
    %v1995 = vld [vmem:[#allocation4 + $0x128] sm:$0xff]
    %v1996 = vld [vmem:[#allocation4 + $0x130] sm:$0xff]
    %v1997 = vld [vmem:[#allocation4 + $0x138] sm:$0xff]
    %v1998 = vld [vmem:[#allocation4 + $0x140] sm:$0xff]
    %v1999 = vld [vmem:[#allocation4 + $0x148] sm:$0xff]
    %v2000 = vld [vmem:[#allocation4 + $0x150] sm:$0xff]
    %v2001 = vld [vmem:[#allocation4 + $0x158] sm:$0xff]
    %v2002 = vld [vmem:[#allocation4 + $0x160] sm:$0xff]
    %v2003 = vld [vmem:[#allocation4 + $0x168] sm:$0xff]
    %v2004 = vld [vmem:[#allocation4 + $0x170] sm:$0xff]
    %v2005 = vld [vmem:[#allocation4 + $0x178] sm:$0xff]
    %v2006 = vld [vmem:[#allocation4 + $0x180] sm:$0xff]
    %v2007 = vld [vmem:[#allocation4 + $0x188] sm:$0xff]
    %v2008 = vld [vmem:[#allocation4 + $0x190] sm:$0xff]
    %v2009 = vld [vmem:[#allocation4 + $0x198] sm:$0xff]
    %v2010 = vld [vmem:[#allocation4 + $0x1a0] sm:$0xff]
    %v2011 = vld [vmem:[#allocation4 + $0x1a8] sm:$0xff]
    %v2012 = vld [vmem:[#allocation4 + $0x1b0] sm:$0xff]
    %v2013 = vld [vmem:[#allocation4 + $0x1b8] sm:$0xff]
    %v2014 = vld [vmem:[#allocation4 + $0x1c0] sm:$0xff]
    %v2015 = vld [vmem:[#allocation4 + $0x1c8] sm:$0xff]
    %v2016 = vld [vmem:[#allocation4 + $0x1d0] sm:$0xff]
    %v2017 = vld [vmem:[#allocation4 + $0x1d8] sm:$0xff]
    %v2018 = vld [vmem:[#allocation4 + $0x1e0] sm:$0xff]
    %v2019 = vld [vmem:[#allocation4 + $0x1e8] sm:$0xff]
    %v2020 = vld [vmem:[#allocation4 + $0x1f0] sm:$0xff]
    %v2021 = vld [vmem:[#allocation4 + $0x1f8] sm:$0xff]
    %v2022 = vld [vmem:[#allocation4 + $0x200] sm:$0xff]
    %v2023 = vld [vmem:[#allocation4 + $0x208] sm:$0xff]
    %v2024 = vld [vmem:[#allocation4 + $0x210] sm:$0xff]
    %v2025 = vld [vmem:[#allocation4 + $0x218] sm:$0xff]
    %v2026 = vld [vmem:[#allocation4 + $0x220] sm:$0xff]
    %v2027 = vld [vmem:[#allocation4 + $0x228] sm:$0xff]
    %v2028 = vld [vmem:[#allocation4 + $0x230] sm:$0xff]
    %v2029 = vld [vmem:[#allocation4 + $0x238] sm:$0xff]
    %v2030 = vld [vmem:[#allocation4 + $0x240] sm:$0xff]
    %v2031 = vld [vmem:[#allocation4 + $0x248] sm:$0xff]
    %v2032 = vld [vmem:[#allocation4 + $0x250] sm:$0xff]
    %v2033 = vld [vmem:[#allocation4 + $0x258] sm:$0xff]
    %v2034 = vld [vmem:[#allocation4 + $0x260] sm:$0xff]
    %v2035 = vld [vmem:[#allocation4 + $0x268] sm:$0xff]
    %v2036 = vld [vmem:[#allocation4 + $0x270] sm:$0xff]
    %v2037 = vld [vmem:[#allocation4 + $0x278] sm:$0xff]
    %v2038 = vld [vmem:[#allocation4 + $0x280] sm:$0xff]
    %v2039 = vld [vmem:[#allocation4 + $0x288] sm:$0xff]
    %v2040 = vld [vmem:[#allocation4 + $0x290] sm:$0xff]
    %v2041 = vld [vmem:[#allocation4 + $0x298] sm:$0xff]
    %v2042 = vld [vmem:[#allocation4 + $0x2a0] sm:$0xff]
    %v2043 = vld [vmem:[#allocation4 + $0x2a8] sm:$0xff]
    %v2044 = vld [vmem:[#allocation4 + $0x2b0] sm:$0xff]
    %v2045 = vld [vmem:[#allocation4 + $0x2b8] sm:$0xff]
    %v2046 = vld [vmem:[#allocation4 + $0x2c0] sm:$0xff]
    %v2047 = vld [vmem:[#allocation4 + $0x2c8] sm:$0xff]
    %v2048 = vld [vmem:[#allocation4 + $0x2d0] sm:$0xff]
    %v2049 = vld [vmem:[#allocation4 + $0x2d8] sm:$0xff]
    %v2050 = vld [vmem:[#allocation4 + $0x2e0] sm:$0xff]
    %v2051 = vld [vmem:[#allocation4 + $0x2e8] sm:$0xff]
    %v2052 = vld [vmem:[#allocation4 + $0x2f0] sm:$0xff]
    %v2053 = vld [vmem:[#allocation4 + $0x2f8] sm:$0xff]
    %v2054 = vld [vmem:[#allocation4 + $0x300] sm:$0xff]
    %v2055 = vld [vmem:[#allocation4 + $0x308] sm:$0xff]
    %v2056 = vld [vmem:[#allocation4 + $0x310] sm:$0xff]
    %v2057 = vld [vmem:[#allocation4 + $0x318] sm:$0xff]
    %v2058 = vld [vmem:[#allocation4 + $0x320] sm:$0xff]
    %v2059 = vld [vmem:[#allocation4 + $0x328] sm:$0xff]
    %v2060 = vld [vmem:[#allocation4 + $0x330] sm:$0xff]
    %v2061 = vld [vmem:[#allocation4 + $0x338] sm:$0xff]
    %v2062 = vld [vmem:[#allocation4 + $0x340] sm:$0xff]
    %v2063 = vld [vmem:[#allocation4 + $0x348] sm:$0xff]
    %v2064 = vld [vmem:[#allocation4 + $0x350] sm:$0xff]
    %v2065 = vld [vmem:[#allocation4 + $0x358] sm:$0xff]
    %v2066 = vld [vmem:[#allocation4 + $0x360] sm:$0xff]
    %v2067 = vld [vmem:[#allocation4 + $0x368] sm:$0xff]
    %v2068 = vld [vmem:[#allocation4 + $0x370] sm:$0xff]
    %v2069 = vld [vmem:[#allocation4 + $0x378] sm:$0xff]
    %v2070 = vld [vmem:[#allocation4 + $0x380] sm:$0xff]
    %v2071 = vld [vmem:[#allocation4 + $0x388] sm:$0xff]
    %v2072 = vld [vmem:[#allocation4 + $0x390] sm:$0xff]
    %v2073 = vld [vmem:[#allocation4 + $0x398] sm:$0xff]
    %v2074 = vld [vmem:[#allocation4 + $0x3a0] sm:$0xff]
    %v2075 = vld [vmem:[#allocation4 + $0x3a8] sm:$0xff]
    %v2076 = vld [vmem:[#allocation4 + $0x3b0] sm:$0xff]
    %v2077 = vld [vmem:[#allocation4 + $0x3b8] sm:$0xff]
    %v2078 = vld [vmem:[#allocation4 + $0x3c0] sm:$0xff]
    %v2079 = vld [vmem:[#allocation4 + $0x3c8] sm:$0xff]
    %v2080 = vld [vmem:[#allocation4 + $0x3d0] sm:$0xff]
    %v2081 = vld [vmem:[#allocation4 + $0x3d8] sm:$0xff]
    %v2082 = vld [vmem:[#allocation4 + $0x3e0] sm:$0xff]
    %v2083 = vld [vmem:[#allocation4 + $0x3e8] sm:$0xff]
    %v2084 = vld [vmem:[#allocation4 + $0x3f0] sm:$0xff]
    %v2085 = vld [vmem:[#allocation4 + $0x3f8] sm:$0xff]
    %v2214 = vunpack.c.l.b16 %v1958
    %v2215 = vunpack.c.h.b16 %v1958
    %v2216 = vunpack.c.l.b16 %v1959
    %v2217 = vunpack.c.h.b16 %v1959
    %v2218 = vunpack.c.l.b16 %v1960
    %v2219 = vunpack.c.h.b16 %v1960
    %v2220 = vunpack.c.l.b16 %v1961
    %v2221 = vunpack.c.h.b16 %v1961
    %v2222 = vunpack.c.l.b16 %v1962
    %v2223 = vunpack.c.h.b16 %v1962
    %v2224 = vunpack.c.l.b16 %v1963
    %v2225 = vunpack.c.h.b16 %v1963
    %v2226 = vunpack.c.l.b16 %v1964
    %v2227 = vunpack.c.h.b16 %v1964
    %v2228 = vunpack.c.l.b16 %v1965
    %v2229 = vunpack.c.h.b16 %v1965
    %v2230 = vunpack.c.l.b16 %v1966
    %v2231 = vunpack.c.h.b16 %v1966
    %v2232 = vunpack.c.l.b16 %v1967
    %v2233 = vunpack.c.h.b16 %v1967
    %v2234 = vunpack.c.l.b16 %v1968
    %v2235 = vunpack.c.h.b16 %v1968
    %v2236 = vunpack.c.l.b16 %v1969
    %v2237 = vunpack.c.h.b16 %v1969
    %v2238 = vunpack.c.l.b16 %v1970
    %v2239 = vunpack.c.h.b16 %v1970
    %v2240 = vunpack.c.l.b16 %v1971
    %v2241 = vunpack.c.h.b16 %v1971
    %v2242 = vunpack.c.l.b16 %v1972
    %v2243 = vunpack.c.h.b16 %v1972
    %v2244 = vunpack.c.l.b16 %v1973
    %v2245 = vunpack.c.h.b16 %v1973
    %v2246 = vunpack.c.l.b16 %v1974
    %v2247 = vunpack.c.h.b16 %v1974
    %v2248 = vunpack.c.l.b16 %v1975
    %v2249 = vunpack.c.h.b16 %v1975
    %v2250 = vunpack.c.l.b16 %v1976
    %v2251 = vunpack.c.h.b16 %v1976
    %v2252 = vunpack.c.l.b16 %v1977
    %v2253 = vunpack.c.h.b16 %v1977
    %v2254 = vunpack.c.l.b16 %v1978
    %v2255 = vunpack.c.h.b16 %v1978
    %v2256 = vunpack.c.l.b16 %v1979
    %v2257 = vunpack.c.h.b16 %v1979
    %v2258 = vunpack.c.l.b16 %v1980
    %v2259 = vunpack.c.h.b16 %v1980
    %v2260 = vunpack.c.l.b16 %v1981
    %v2261 = vunpack.c.h.b16 %v1981
    %v2262 = vunpack.c.l.b16 %v1982
    %v2263 = vunpack.c.h.b16 %v1982
    %v2264 = vunpack.c.l.b16 %v1983
    %v2265 = vunpack.c.h.b16 %v1983
    %v2266 = vunpack.c.l.b16 %v1984
    %v2267 = vunpack.c.h.b16 %v1984
    %v2268 = vunpack.c.l.b16 %v1985
    %v2269 = vunpack.c.h.b16 %v1985
    %v2270 = vunpack.c.l.b16 %v1986
    %v2271 = vunpack.c.h.b16 %v1986
    %v2272 = vunpack.c.l.b16 %v1987
    %v2273 = vunpack.c.h.b16 %v1987
    %v2274 = vunpack.c.l.b16 %v1988
    %v2275 = vunpack.c.h.b16 %v1988
    %v2276 = vunpack.c.l.b16 %v1989
    %v2277 = vunpack.c.h.b16 %v1989
    %v2278 = vunpack.c.l.b16 %v1990
    %v2279 = vunpack.c.h.b16 %v1990
    %v2280 = vunpack.c.l.b16 %v1991
    %v2281 = vunpack.c.h.b16 %v1991
    %v2282 = vunpack.c.l.b16 %v1992
    %v2283 = vunpack.c.h.b16 %v1992
    %v2284 = vunpack.c.l.b16 %v1993
    %v2285 = vunpack.c.h.b16 %v1993
    %v2286 = vunpack.c.l.b16 %v1994
    %v2287 = vunpack.c.h.b16 %v1994
    %v2288 = vunpack.c.l.b16 %v1995
    %v2289 = vunpack.c.h.b16 %v1995
    %v2290 = vunpack.c.l.b16 %v1996
    %v2291 = vunpack.c.h.b16 %v1996
    %v2292 = vunpack.c.l.b16 %v1997
    %v2293 = vunpack.c.h.b16 %v1997
    %v2294 = vunpack.c.l.b16 %v1998
    %v2295 = vunpack.c.h.b16 %v1998
    %v2296 = vunpack.c.l.b16 %v1999
    %v2297 = vunpack.c.h.b16 %v1999
    %v2298 = vunpack.c.l.b16 %v2000
    %v2299 = vunpack.c.h.b16 %v2000
    %v2300 = vunpack.c.l.b16 %v2001
    %v2301 = vunpack.c.h.b16 %v2001
    %v2302 = vunpack.c.l.b16 %v2002
    %v2303 = vunpack.c.h.b16 %v2002
    %v2304 = vunpack.c.l.b16 %v2003
    %v2305 = vunpack.c.h.b16 %v2003
    %v2306 = vunpack.c.l.b16 %v2004
    %v2307 = vunpack.c.h.b16 %v2004
    %v2308 = vunpack.c.l.b16 %v2005
    %v2309 = vunpack.c.h.b16 %v2005
    %v2310 = vunpack.c.l.b16 %v2006
    %v2311 = vunpack.c.h.b16 %v2006
    %v2312 = vunpack.c.l.b16 %v2007
    %v2313 = vunpack.c.h.b16 %v2007
    %v2314 = vunpack.c.l.b16 %v2008
    %v2315 = vunpack.c.h.b16 %v2008
    %v2316 = vunpack.c.l.b16 %v2009
    %v2317 = vunpack.c.h.b16 %v2009
    %v2318 = vunpack.c.l.b16 %v2010
    %v2319 = vunpack.c.h.b16 %v2010
    %v2320 = vunpack.c.l.b16 %v2011
    %v2321 = vunpack.c.h.b16 %v2011
    %v2322 = vunpack.c.l.b16 %v2012
    %v2323 = vunpack.c.h.b16 %v2012
    %v2324 = vunpack.c.l.b16 %v2013
    %v2325 = vunpack.c.h.b16 %v2013
    %v2326 = vunpack.c.l.b16 %v2014
    %v2327 = vunpack.c.h.b16 %v2014
    %v2328 = vunpack.c.l.b16 %v2015
    %v2329 = vunpack.c.h.b16 %v2015
    %v2330 = vunpack.c.l.b16 %v2016
    %v2331 = vunpack.c.h.b16 %v2016
    %v2332 = vunpack.c.l.b16 %v2017
    %v2333 = vunpack.c.h.b16 %v2017
    %v2334 = vunpack.c.l.b16 %v2018
    %v2335 = vunpack.c.h.b16 %v2018
    %v2336 = vunpack.c.l.b16 %v2019
    %v2337 = vunpack.c.h.b16 %v2019
    %v2338 = vunpack.c.l.b16 %v2020
    %v2339 = vunpack.c.h.b16 %v2020
    %v2340 = vunpack.c.l.b16 %v2021
    %v2341 = vunpack.c.h.b16 %v2021
    %v2342 = vunpack.c.l.b16 %v2022
    %v2343 = vunpack.c.h.b16 %v2022
    %v2344 = vunpack.c.l.b16 %v2023
    %v2345 = vunpack.c.h.b16 %v2023
    %v2346 = vunpack.c.l.b16 %v2024
    %v2347 = vunpack.c.h.b16 %v2024
    %v2348 = vunpack.c.l.b16 %v2025
    %v2349 = vunpack.c.h.b16 %v2025
    %v2350 = vunpack.c.l.b16 %v2026
    %v2351 = vunpack.c.h.b16 %v2026
    %v2352 = vunpack.c.l.b16 %v2027
    %v2353 = vunpack.c.h.b16 %v2027
    %v2354 = vunpack.c.l.b16 %v2028
    %v2355 = vunpack.c.h.b16 %v2028
    %v2356 = vunpack.c.l.b16 %v2029
    %v2357 = vunpack.c.h.b16 %v2029
    %v2358 = vunpack.c.l.b16 %v2030
    %v2359 = vunpack.c.h.b16 %v2030
    %v2360 = vunpack.c.l.b16 %v2031
    %v2361 = vunpack.c.h.b16 %v2031
    %v2362 = vunpack.c.l.b16 %v2032
    %v2363 = vunpack.c.h.b16 %v2032
    %v2364 = vunpack.c.l.b16 %v2033
    %v2365 = vunpack.c.h.b16 %v2033
    %v2366 = vunpack.c.l.b16 %v2034
    %v2367 = vunpack.c.h.b16 %v2034
    %v2368 = vunpack.c.l.b16 %v2035
    %v2369 = vunpack.c.h.b16 %v2035
    %v2370 = vunpack.c.l.b16 %v2036
    %v2371 = vunpack.c.h.b16 %v2036
    %v2372 = vunpack.c.l.b16 %v2037
    %v2373 = vunpack.c.h.b16 %v2037
    %v2374 = vunpack.c.l.b16 %v2038
    %v2375 = vunpack.c.h.b16 %v2038
    %v2376 = vunpack.c.l.b16 %v2039
    %v2377 = vunpack.c.h.b16 %v2039
    %v2378 = vunpack.c.l.b16 %v2040
    %v2379 = vunpack.c.h.b16 %v2040
    %v2380 = vunpack.c.l.b16 %v2041
    %v2381 = vunpack.c.h.b16 %v2041
    %v2382 = vunpack.c.l.b16 %v2042
    %v2383 = vunpack.c.h.b16 %v2042
    %v2384 = vunpack.c.l.b16 %v2043
    %v2385 = vunpack.c.h.b16 %v2043
    %v2386 = vunpack.c.l.b16 %v2044
    %v2387 = vunpack.c.h.b16 %v2044
    %v2388 = vunpack.c.l.b16 %v2045
    %v2389 = vunpack.c.h.b16 %v2045
    %v2390 = vunpack.c.l.b16 %v2046
    %v2391 = vunpack.c.h.b16 %v2046
    %v2392 = vunpack.c.l.b16 %v2047
    %v2393 = vunpack.c.h.b16 %v2047
    %v2394 = vunpack.c.l.b16 %v2048
    %v2395 = vunpack.c.h.b16 %v2048
    %v2396 = vunpack.c.l.b16 %v2049
    %v2397 = vunpack.c.h.b16 %v2049
    %v2398 = vunpack.c.l.b16 %v2050
    %v2399 = vunpack.c.h.b16 %v2050
    %v2400 = vunpack.c.l.b16 %v2051
    %v2401 = vunpack.c.h.b16 %v2051
    %v2402 = vunpack.c.l.b16 %v2052
    %v2403 = vunpack.c.h.b16 %v2052
    %v2404 = vunpack.c.l.b16 %v2053
    %v2405 = vunpack.c.h.b16 %v2053
    %v2406 = vunpack.c.l.b16 %v2054
    %v2407 = vunpack.c.h.b16 %v2054
    %v2408 = vunpack.c.l.b16 %v2055
    %v2409 = vunpack.c.h.b16 %v2055
    %v2410 = vunpack.c.l.b16 %v2056
    %v2411 = vunpack.c.h.b16 %v2056
    %v2412 = vunpack.c.l.b16 %v2057
    %v2413 = vunpack.c.h.b16 %v2057
    %v2414 = vunpack.c.l.b16 %v2058
    %v2415 = vunpack.c.h.b16 %v2058
    %v2416 = vunpack.c.l.b16 %v2059
    %v2417 = vunpack.c.h.b16 %v2059
    %v2418 = vunpack.c.l.b16 %v2060
    %v2419 = vunpack.c.h.b16 %v2060
    %v2420 = vunpack.c.l.b16 %v2061
    %v2421 = vunpack.c.h.b16 %v2061
    %v2422 = vunpack.c.l.b16 %v2062
    %v2423 = vunpack.c.h.b16 %v2062
    %v2424 = vunpack.c.l.b16 %v2063
    %v2425 = vunpack.c.h.b16 %v2063
    %v2426 = vunpack.c.l.b16 %v2064
    %v2427 = vunpack.c.h.b16 %v2064
    %v2428 = vunpack.c.l.b16 %v2065
    %v2429 = vunpack.c.h.b16 %v2065
    %v2430 = vunpack.c.l.b16 %v2066
    %v2431 = vunpack.c.h.b16 %v2066
    %v2432 = vunpack.c.l.b16 %v2067
    %v2433 = vunpack.c.h.b16 %v2067
    %v2434 = vunpack.c.l.b16 %v2068
    %v2435 = vunpack.c.h.b16 %v2068
    %v2436 = vunpack.c.l.b16 %v2069
    %v2437 = vunpack.c.h.b16 %v2069
    %v2438 = vunpack.c.l.b16 %v2070
    %v2439 = vunpack.c.h.b16 %v2070
    %v2440 = vunpack.c.l.b16 %v2071
    %v2441 = vunpack.c.h.b16 %v2071
    %v2442 = vunpack.c.l.b16 %v2072
    %v2443 = vunpack.c.h.b16 %v2072
    %v2444 = vunpack.c.l.b16 %v2073
    %v2445 = vunpack.c.h.b16 %v2073
    %v2446 = vunpack.c.l.b16 %v2074
    %v2447 = vunpack.c.h.b16 %v2074
    %v2448 = vunpack.c.l.b16 %v2075
    %v2449 = vunpack.c.h.b16 %v2075
    %v2450 = vunpack.c.l.b16 %v2076
    %v2451 = vunpack.c.h.b16 %v2076
    %v2452 = vunpack.c.l.b16 %v2077
    %v2453 = vunpack.c.h.b16 %v2077
    %v2454 = vunpack.c.l.b16 %v2078
    %v2455 = vunpack.c.h.b16 %v2078
    %v2456 = vunpack.c.l.b16 %v2079
    %v2457 = vunpack.c.h.b16 %v2079
    %v2458 = vunpack.c.l.b16 %v2080
    %v2459 = vunpack.c.h.b16 %v2080
    %v2460 = vunpack.c.l.b16 %v2081
    %v2461 = vunpack.c.h.b16 %v2081
    %v2462 = vunpack.c.l.b16 %v2082
    %v2463 = vunpack.c.h.b16 %v2082
    %v2464 = vunpack.c.l.b16 %v2083
    %v2465 = vunpack.c.h.b16 %v2083
    %v2466 = vunpack.c.l.b16 %v2084
    %v2467 = vunpack.c.h.b16 %v2084
    %v2468 = vunpack.c.l.b16 %v2085
    %v2469 = vunpack.c.h.b16 %v2085
    %v2470 = vpack.c.b16 %v2218, %v2214
    %v2471 = vpack.c.b16 %v2219, %v2215
    %v2472 = vpack.c.b16 %v2220, %v2216
    %v2473 = vpack.c.b16 %v2221, %v2217
    %v2474 = vpack.c.b16 %v2226, %v2222
    %v2475 = vpack.c.b16 %v2227, %v2223
    %v2476 = vpack.c.b16 %v2228, %v2224
    %v2477 = vpack.c.b16 %v2229, %v2225
    %v2478 = vpack.c.b16 %v2234, %v2230
    %v2479 = vpack.c.b16 %v2235, %v2231
    %v2480 = vpack.c.b16 %v2236, %v2232
    %v2481 = vpack.c.b16 %v2237, %v2233
    %v2482 = vpack.c.b16 %v2242, %v2238
    %v2483 = vpack.c.b16 %v2243, %v2239
    %v2484 = vpack.c.b16 %v2244, %v2240
    %v2485 = vpack.c.b16 %v2245, %v2241
    %v2486 = vpack.c.b16 %v2250, %v2246
    %v2487 = vpack.c.b16 %v2251, %v2247
    %v2488 = vpack.c.b16 %v2252, %v2248
    %v2489 = vpack.c.b16 %v2253, %v2249
    %v2490 = vpack.c.b16 %v2258, %v2254
    %v2491 = vpack.c.b16 %v2259, %v2255
    %v2492 = vpack.c.b16 %v2260, %v2256
    %v2493 = vpack.c.b16 %v2261, %v2257
    %v2494 = vpack.c.b16 %v2266, %v2262
    %v2495 = vpack.c.b16 %v2267, %v2263
    %v2496 = vpack.c.b16 %v2268, %v2264
    %v2497 = vpack.c.b16 %v2269, %v2265
    %v2498 = vpack.c.b16 %v2274, %v2270
    %v2499 = vpack.c.b16 %v2275, %v2271
    %v2500 = vpack.c.b16 %v2276, %v2272
    %v2501 = vpack.c.b16 %v2277, %v2273
    %v2502 = vpack.c.b16 %v2282, %v2278
    %v2503 = vpack.c.b16 %v2283, %v2279
    %v2504 = vpack.c.b16 %v2284, %v2280
    %v2505 = vpack.c.b16 %v2285, %v2281
    %v2506 = vpack.c.b16 %v2290, %v2286
    %v2507 = vpack.c.b16 %v2291, %v2287
    %v2508 = vpack.c.b16 %v2292, %v2288
    %v2509 = vpack.c.b16 %v2293, %v2289
    %v2510 = vpack.c.b16 %v2298, %v2294
    %v2511 = vpack.c.b16 %v2299, %v2295
    %v2512 = vpack.c.b16 %v2300, %v2296
    %v2513 = vpack.c.b16 %v2301, %v2297
    %v2514 = vpack.c.b16 %v2306, %v2302
    %v2515 = vpack.c.b16 %v2307, %v2303
    %v2516 = vpack.c.b16 %v2308, %v2304
    %v2517 = vpack.c.b16 %v2309, %v2305
    %v2518 = vpack.c.b16 %v2314, %v2310
    %v2519 = vpack.c.b16 %v2315, %v2311
    %v2520 = vpack.c.b16 %v2316, %v2312
    %v2521 = vpack.c.b16 %v2317, %v2313
    %v2522 = vpack.c.b16 %v2322, %v2318
    %v2523 = vpack.c.b16 %v2323, %v2319
    %v2524 = vpack.c.b16 %v2324, %v2320
    %v2525 = vpack.c.b16 %v2325, %v2321
    %v2526 = vpack.c.b16 %v2330, %v2326
    %v2527 = vpack.c.b16 %v2331, %v2327
    %v2528 = vpack.c.b16 %v2332, %v2328
    %v2529 = vpack.c.b16 %v2333, %v2329
    %v2530 = vpack.c.b16 %v2338, %v2334
    %v2531 = vpack.c.b16 %v2339, %v2335
    %v2532 = vpack.c.b16 %v2340, %v2336
    %v2533 = vpack.c.b16 %v2341, %v2337
    %v2534 = vpack.c.b16 %v2346, %v2342
    %v2535 = vpack.c.b16 %v2347, %v2343
    %v2536 = vpack.c.b16 %v2348, %v2344
    %v2537 = vpack.c.b16 %v2349, %v2345
    %v2538 = vpack.c.b16 %v2354, %v2350
    %v2539 = vpack.c.b16 %v2355, %v2351
    %v2540 = vpack.c.b16 %v2356, %v2352
    %v2541 = vpack.c.b16 %v2357, %v2353
    %v2542 = vpack.c.b16 %v2362, %v2358
    %v2543 = vpack.c.b16 %v2363, %v2359
    %v2544 = vpack.c.b16 %v2364, %v2360
    %v2545 = vpack.c.b16 %v2365, %v2361
    %v2546 = vpack.c.b16 %v2370, %v2366
    %v2547 = vpack.c.b16 %v2371, %v2367
    %v2548 = vpack.c.b16 %v2372, %v2368
    %v2549 = vpack.c.b16 %v2373, %v2369
    %v2550 = vpack.c.b16 %v2378, %v2374
    %v2551 = vpack.c.b16 %v2379, %v2375
    %v2552 = vpack.c.b16 %v2380, %v2376
    %v2553 = vpack.c.b16 %v2381, %v2377
    %v2554 = vpack.c.b16 %v2386, %v2382
    %v2555 = vpack.c.b16 %v2387, %v2383
    %v2556 = vpack.c.b16 %v2388, %v2384
    %v2557 = vpack.c.b16 %v2389, %v2385
    %v2558 = vpack.c.b16 %v2394, %v2390
    %v2559 = vpack.c.b16 %v2395, %v2391
    %v2560 = vpack.c.b16 %v2396, %v2392
    %v2561 = vpack.c.b16 %v2397, %v2393
    %v2562 = vpack.c.b16 %v2402, %v2398
    %v2563 = vpack.c.b16 %v2403, %v2399
    %v2564 = vpack.c.b16 %v2404, %v2400
    %v2565 = vpack.c.b16 %v2405, %v2401
    %v2566 = vpack.c.b16 %v2410, %v2406
    %v2567 = vpack.c.b16 %v2411, %v2407
    %v2568 = vpack.c.b16 %v2412, %v2408
    %v2569 = vpack.c.b16 %v2413, %v2409
    %v2570 = vpack.c.b16 %v2418, %v2414
    %v2571 = vpack.c.b16 %v2419, %v2415
    %v2572 = vpack.c.b16 %v2420, %v2416
    %v2573 = vpack.c.b16 %v2421, %v2417
    %v2574 = vpack.c.b16 %v2426, %v2422
    %v2575 = vpack.c.b16 %v2427, %v2423
    %v2576 = vpack.c.b16 %v2428, %v2424
    %v2577 = vpack.c.b16 %v2429, %v2425
    %v2578 = vpack.c.b16 %v2434, %v2430
    %v2579 = vpack.c.b16 %v2435, %v2431
    %v2580 = vpack.c.b16 %v2436, %v2432
    %v2581 = vpack.c.b16 %v2437, %v2433
    %v2582 = vpack.c.b16 %v2442, %v2438
    %v2583 = vpack.c.b16 %v2443, %v2439
    %v2584 = vpack.c.b16 %v2444, %v2440
    %v2585 = vpack.c.b16 %v2445, %v2441
    %v2586 = vpack.c.b16 %v2450, %v2446
    %v2587 = vpack.c.b16 %v2451, %v2447
    %v2588 = vpack.c.b16 %v2452, %v2448
    %v2589 = vpack.c.b16 %v2453, %v2449
    %v2590 = vpack.c.b16 %v2458, %v2454
    %v2591 = vpack.c.b16 %v2459, %v2455
    %v2592 = vpack.c.b16 %v2460, %v2456
    %v2593 = vpack.c.b16 %v2461, %v2457
    %v2594 = vpack.c.b16 %v2466, %v2462
    %v2595 = vpack.c.b16 %v2467, %v2463
    %v2596 = vpack.c.b16 %v2468, %v2464
    %v2597 = vpack.c.b16 %v2469, %v2465
    %2726 = vmatprep.subr.bf16.mxu0 %v2471
    %2727 = vmatpush1.bf16.msra.mxu0 %v2470
    %2728 = vmatprep.subr.bf16.mxu0 %v2475
    %2729 = vmatpush1.bf16.msra.mxu0 %v2474
    %2730 = vmatprep.subr.bf16.mxu0 %v2479
    %2731 = vmatpush1.bf16.msra.mxu0 %v2478
    %2732 = vmatprep.subr.bf16.mxu0 %v2483
    %2733 = vmatpush1.bf16.msra.mxu0 %v2482
    %2734 = vmatprep.subr.bf16.mxu0 %v2487
    %2735 = vmatpush1.bf16.msra.mxu0 %v2486
    %2736 = vmatprep.subr.bf16.mxu0 %v2491
    %2737 = vmatpush1.bf16.msra.mxu0 %v2490
    %2738 = vmatprep.subr.bf16.mxu0 %v2495
    %2739 = vmatpush1.bf16.msra.mxu0 %v2494
    %2740 = vmatprep.subr.bf16.mxu0 %v2499
    %2741 = vmatpush1.bf16.msra.mxu0 %v2498
    %2742 = vmatprep.subr.bf16.mxu0 %v2503
    %2743 = vmatpush1.bf16.msra.mxu0 %v2502
    %2744 = vmatprep.subr.bf16.mxu0 %v2507
    %2745 = vmatpush1.bf16.msra.mxu0 %v2506
    %2746 = vmatprep.subr.bf16.mxu0 %v2511
    %2747 = vmatpush1.bf16.msra.mxu0 %v2510
    %2748 = vmatprep.subr.bf16.mxu0 %v2515
    %2749 = vmatpush1.bf16.msra.mxu0 %v2514
    %2750 = vmatprep.subr.bf16.mxu0 %v2519
    %2751 = vmatpush1.bf16.msra.mxu0 %v2518
    %2752 = vmatprep.subr.bf16.mxu0 %v2523
    %2753 = vmatpush1.bf16.msra.mxu0 %v2522
    %2754 = vmatprep.subr.bf16.mxu0 %v2527
    %2755 = vmatpush1.bf16.msra.mxu0 %v2526
    %2756 = vmatprep.subr.bf16.mxu0 %v2531
    %2757 = vmatpush1.bf16.msra.mxu0 %v2530
    %2758 = vmatprep.mubr.bf16.mxu0 %v1955
    %2759 = vmatmul.mubr.bf16.gmra.mrb[0].mxu0 %v1954
    %v2760 = vpop.f32.mrb[0].mxu0
    %v2761 = vadd.f32 0.0, %v2760
    %v2762 = vpop.f32.mrb[0].mxu0
    %v2763 = vadd.f32 0.0, %v2762
    %v2764 = vpop.f32.mrb[0].mxu0
    %v2765 = vpop.f32.mrb[0].mxu0
    %2766 = vdwg.mxu0
    %2767 = vmatprep.subr.bf16.mxu0 %v2535
    %2768 = vmatpush1.bf16.msra.mxu0 %v2534
    %2769 = vmatprep.subr.bf16.mxu0 %v2539
    %2770 = vmatpush1.bf16.msra.mxu0 %v2538
    %2771 = vmatprep.subr.bf16.mxu0 %v2543
    %2772 = vmatpush1.bf16.msra.mxu0 %v2542
    %2773 = vmatprep.subr.bf16.mxu0 %v2547
    %2774 = vmatpush1.bf16.msra.mxu0 %v2546
    %2775 = vmatprep.subr.bf16.mxu0 %v2551
    %2776 = vmatpush1.bf16.msra.mxu0 %v2550
    %2777 = vmatprep.subr.bf16.mxu0 %v2555
    %2778 = vmatpush1.bf16.msra.mxu0 %v2554
    %2779 = vmatprep.subr.bf16.mxu0 %v2559
    %2780 = vmatpush1.bf16.msra.mxu0 %v2558
    %2781 = vmatprep.subr.bf16.mxu0 %v2563
    %2782 = vmatpush1.bf16.msra.mxu0 %v2562
    %2783 = vmatprep.subr.bf16.mxu0 %v2567
    %2784 = vmatpush1.bf16.msra.mxu0 %v2566
    %2785 = vmatprep.subr.bf16.mxu0 %v2571
    %2786 = vmatpush1.bf16.msra.mxu0 %v2570
    %2787 = vmatprep.subr.bf16.mxu0 %v2575
    %2788 = vmatpush1.bf16.msra.mxu0 %v2574
    %2789 = vmatprep.subr.bf16.mxu0 %v2579
    %2790 = vmatpush1.bf16.msra.mxu0 %v2578
    %2791 = vmatprep.subr.bf16.mxu0 %v2583
    %2792 = vmatpush1.bf16.msra.mxu0 %v2582
    %2793 = vmatprep.subr.bf16.mxu0 %v2587
    %2794 = vmatpush1.bf16.msra.mxu0 %v2586
    %2795 = vmatprep.subr.bf16.mxu0 %v2591
    %2796 = vmatpush1.bf16.msra.mxu0 %v2590
    %2797 = vmatprep.subr.bf16.mxu0 %v2595
    %2798 = vmatpush1.bf16.msra.mxu0 %v2594
    %2799 = vmatprep.mubr.bf16.mxu0 %v1957
    %2800 = vmatmul.mubr.bf16.gmra.mrb[0].mxu0 %v1956
    %v2801 = vpop.f32.mrb[0].mxu0
    %v2802 = vadd.f32 %v2761, %v2801
    %v2803 = vpop.f32.mrb[0].mxu0
    %v2804 = vadd.f32 %v2763, %v2803
    %v2805 = vpop.f32.mrb[0].mxu0
    %v2806 = vpop.f32.mrb[0].mxu0
    %2807 = vdwg.mxu0
    %2808 = vmatprep.subr.bf16.mxu0 %v2473
    %2809 = vmatpush1.bf16.msra.mxu0 %v2472
    %2810 = vmatprep.subr.bf16.mxu0 %v2477
    %2811 = vmatpush1.bf16.msra.mxu0 %v2476
    %2812 = vmatprep.subr.bf16.mxu0 %v2481
    %2813 = vmatpush1.bf16.msra.mxu0 %v2480
    %2814 = vmatprep.subr.bf16.mxu0 %v2485
    %2815 = vmatpush1.bf16.msra.mxu0 %v2484
    %2816 = vmatprep.subr.bf16.mxu0 %v2489
    %2817 = vmatpush1.bf16.msra.mxu0 %v2488
    %2818 = vmatprep.subr.bf16.mxu0 %v2493
    %2819 = vmatpush1.bf16.msra.mxu0 %v2492
    %2820 = vmatprep.subr.bf16.mxu0 %v2497
    %2821 = vmatpush1.bf16.msra.mxu0 %v2496
    %2822 = vmatprep.subr.bf16.mxu0 %v2501
    %2823 = vmatpush1.bf16.msra.mxu0 %v2500
    %2824 = vmatprep.subr.bf16.mxu0 %v2505
    %2825 = vmatpush1.bf16.msra.mxu0 %v2504
    %2826 = vmatprep.subr.bf16.mxu0 %v2509
    %2827 = vmatpush1.bf16.msra.mxu0 %v2508
    %2828 = vmatprep.subr.bf16.mxu0 %v2513
    %2829 = vmatpush1.bf16.msra.mxu0 %v2512
    %2830 = vmatprep.subr.bf16.mxu0 %v2517
    %2831 = vmatpush1.bf16.msra.mxu0 %v2516
    %2832 = vmatprep.subr.bf16.mxu0 %v2521
    %2833 = vmatpush1.bf16.msra.mxu0 %v2520
    %2834 = vmatprep.subr.bf16.mxu0 %v2525
    %2835 = vmatpush1.bf16.msra.mxu0 %v2524
    %2836 = vmatprep.subr.bf16.mxu0 %v2529
    %2837 = vmatpush1.bf16.msra.mxu0 %v2528
    %2838 = vmatprep.subr.bf16.mxu0 %v2533
    %2839 = vmatpush1.bf16.msra.mxu0 %v2532
    %2840 = vmatprep.mubr.bf16.mxu0 %v1955
    %2841 = vmatmul.mubr.bf16.gmra.mrb[0].mxu0 %v1954
    %v2842 = vpop.f32.mrb[0].mxu0
    %v2843 = vadd.f32 0.0, %v2842
    %v2844 = vpop.f32.mrb[0].mxu0
    %v2845 = vadd.f32 0.0, %v2844
    %v2846 = vpop.f32.mrb[0].mxu0
    %v2847 = vpop.f32.mrb[0].mxu0
    %2848 = vdwg.mxu0
    %2849 = vmatprep.subr.bf16.mxu0 %v2537
    %2850 = vmatpush1.bf16.msra.mxu0 %v2536
    %2851 = vmatprep.subr.bf16.mxu0 %v2541
    %2852 = vmatpush1.bf16.msra.mxu0 %v2540
    %2853 = vmatprep.subr.bf16.mxu0 %v2545
    %2854 = vmatpush1.bf16.msra.mxu0 %v2544
    %2855 = vmatprep.subr.bf16.mxu0 %v2549
    %2856 = vmatpush1.bf16.msra.mxu0 %v2548
    %2857 = vmatprep.subr.bf16.mxu0 %v2553
    %2858 = vmatpush1.bf16.msra.mxu0 %v2552
    %2859 = vmatprep.subr.bf16.mxu0 %v2557
    %2860 = vmatpush1.bf16.msra.mxu0 %v2556
    %2861 = vmatprep.subr.bf16.mxu0 %v2561
    %2862 = vmatpush1.bf16.msra.mxu0 %v2560
    %2863 = vmatprep.subr.bf16.mxu0 %v2565
    %2864 = vmatpush1.bf16.msra.mxu0 %v2564
    %2865 = vmatprep.subr.bf16.mxu0 %v2569
    %2866 = vmatpush1.bf16.msra.mxu0 %v2568
    %2867 = vmatprep.subr.bf16.mxu0 %v2573
    %2868 = vmatpush1.bf16.msra.mxu0 %v2572
    %2869 = vmatprep.subr.bf16.mxu0 %v2577
    %2870 = vmatpush1.bf16.msra.mxu0 %v2576
    %2871 = vmatprep.subr.bf16.mxu0 %v2581
    %2872 = vmatpush1.bf16.msra.mxu0 %v2580
    %2873 = vmatprep.subr.bf16.mxu0 %v2585
    %2874 = vmatpush1.bf16.msra.mxu0 %v2584
    %2875 = vmatprep.subr.bf16.mxu0 %v2589
    %2876 = vmatpush1.bf16.msra.mxu0 %v2588
    %2877 = vmatprep.subr.bf16.mxu0 %v2593
    %2878 = vmatpush1.bf16.msra.mxu0 %v2592
    %2879 = vmatprep.subr.bf16.mxu0 %v2597
    %2880 = vmatpush1.bf16.msra.mxu0 %v2596
    %2881 = vmatprep.mubr.bf16.mxu0 %v1957
    %2882 = vmatmul.mubr.bf16.gmra.mrb[0].mxu0 %v1956
    %v2883 = vpop.f32.mrb[0].mxu0
    %v2884 = vadd.f32 %v2843, %v2883
    %v2885 = vpop.f32.mrb[0].mxu0
    %v2886 = vadd.f32 %v2845, %v2885
    %v2887 = vpop.f32.mrb[0].mxu0
    %v2888 = vpop.f32.mrb[0].mxu0
    %2889 = vdwg.mxu0
    %v2890 = vxor.u32 %v2802, 2147483648
    %v2891 = vxor.u32 %v2804, 2147483648
    %v2892 = vxor.u32 %v2884, 2147483648
    %v2893 = vxor.u32 %v2886, 2147483648
    %v2894 = vmul.f32 %v2890, 1.442695
    %v2895 = vpow.pop %v2894
    %v2896 = vmul.f32 %v2891, 1.442695
    %v2897 = vpow.pop %v2896
    %v2898 = vmul.f32 %v2892, 1.442695
    %v2899 = vpow.pop %v2898
    %v2900 = vmul.f32 %v2893, 1.442695
    %v2901 = vpow.pop %v2900
    %v2902 = vadd.f32 %v2895, 1.0
    %v2903 = vadd.f32 %v2897, 1.0
    %v2904 = vadd.f32 %v2899, 1.0
    %v2905 = vadd.f32 %v2901, 1.0
    %v2906 = vrcp.pop %v2902
    %v2907 = vmul.f32 1.0, %v2906
    %v2908 = vrcp.pop %v2903
    %v2909 = vmul.f32 1.0, %v2908
    %v2910 = vrcp.pop %v2904
    %v2911 = vmul.f32 1.0, %v2910
    %v2912 = vrcp.pop %v2905
    %v2913 = vmul.f32 1.0, %v2912
    %v2918 = vcombine.low %v2907, %v2909
    %v2919 = vcombine.low %v2911, %v2913
    %2922 = vst [vmem:[%s3] sm:$0xff] %v2918
    %2923 = vst [vmem:[%s3 + $0x8] sm:$0xff] %v2919
    // Predicated region
    $region22: #{contrastive_forward.1} parent=1 // pred_check
      _
    $region23: #{contrastive_forward.1} parent=1 // pred_check_branch
      %2925 = sbr.rel (0) target = $region25
    $region24: #{contrastive_forward.1} parent=1 // pred_region
      _
    $region25: #{contrastive_forward.1} parent=1 // pred_fallthru
      _
    // Predicated region
    $region26: #{contrastive_forward.1} parent=1 // pred_check
      _
    $region27: #{contrastive_forward.1} parent=1 // pred_check_branch
      %2927 = sbr.rel (0) target = $region29
    $region28: #{contrastive_forward.1} parent=1 // pred_region
      _
    $region29: #{contrastive_forward.1} parent=1 // pred_fallthru
      _
    %2928 = vsyncpa [#allocation3], 1
    %2929 = vsyncpa [#allocation5], 1

</llo_original>
